<compile_context>
chip_gen: v7x
topology: tpu7x:2x2x1
jax: 0.10.0
libtpu: 0.0.40
codegen_flags: <defaults>
</compile_context>

<pallas_src>
import functools

import jax
import jax.numpy as jnp
from jax import lax
from jax.experimental import pallas as pl
from jax.experimental.pallas import tpu as pltpu


# ---------------------------------------------------------------------------
# Fused Pallas kernel: one grid step handles `block_g` (batch, time) groups.
# ---------------------------------------------------------------------------

def _fused_kernel(nc, xg_ref, w1_ref, b1_ref, gamma_ref, beta_ref,
                  w2_ref, b2_ref, wfc_ref, bfc_ref, o_ref):
    # --- stage 1: temporal conv (conv_c | conv_t fused in one matmul) + GLU
    #     xg: (BG, n*c*kt), w1: (n*c*kt, 3*n*c) block-diagonal per node.
    y1 = (jnp.dot(xg_ref[...], w1_ref[...],
                  preferred_element_type=jnp.float32) + b1_ref[...])
    x_c = y1[:, :nc]                     # conv_c output
    x_a = y1[:, nc:2 * nc]               # conv_t, first half
    x_b = y1[:, 2 * nc:3 * nc]           # conv_t, gate half
    x_t1 = (x_a + x_c) * jax.nn.sigmoid(x_b)            # (BG, n*c)

    # --- stage 2: LayerNorm over the whole (n, c) group == the lane axis
    mu = jnp.mean(x_t1, axis=-1, keepdims=True)
    d = x_t1 - mu
    var = jnp.mean(d * d, axis=-1, keepdims=True)
    x_ln = d * lax.rsqrt(var + 1e-5) * gamma_ref[...] + beta_ref[...]

    # --- stage 3: 1x1 conv (block-diagonal weight) + residual, sigmoid
    x2 = (jnp.dot(x_ln, w2_ref[...], preferred_element_type=jnp.float32)
          + b2_ref[...])
    x_t2 = jax.nn.sigmoid(x2 + x_ln)                    # (BG, n*c)

    # --- stage 4: fc 1x1 conv to a single output channel per node
    o_ref[...] = (jnp.dot(x_t2, wfc_ref[...],
                          preferred_element_type=jnp.float32) + bfc_ref[...])


# ---------------------------------------------------------------------------
# Wrapper: layout prep (im2col, block-diagonal weight expansion) + pallas_call.
# ---------------------------------------------------------------------------

def output_time_conv_forward(x, params, kt, block_g=8):
    # x: NCHW = (b, c, T, n) exactly like the PyTorch module.
    b, c, T, n = x.shape
    Tp = T - kt + 1
    nc = n * c
    nckt = n * c * kt
    G = b * Tp

    # im2col: one row per (batch, out-time) group; features ordered
    # (node, channel, tap) so a whole group is a single lane-dense row.
    xl = jnp.transpose(x, (0, 2, 3, 1))                          # (b, T, n, c)
    taps = jnp.stack([xl[:, k:k + Tp] for k in range(kt)], axis=-1)
    xg = taps.reshape(G, nckt)                                   # (G, n*c*kt)

    g_pad = ((G + block_g - 1) // block_g) * block_g
    if g_pad != G:
        xg = jnp.pad(xg, ((0, g_pad - G), (0, 0)))

    eye_n = jnp.eye(n, dtype=jnp.float32)

    # stage 1 weights: concat conv_c / conv_t, expand block-diagonal per node.
    w_c = params['conv_c_w'][:, :, :, 0].reshape(c, c * kt).T        # (c*kt, c)
    w_t = params['conv_t_w'][:, :, :, 0].reshape(2 * c, c * kt).T    # (c*kt, 2c)
    w1 = jnp.concatenate([w_c, w_t], axis=1).reshape(c * kt, 3, c)
    w1_big = jnp.einsum('ab,kso->aksbo', eye_n, w1).reshape(nckt, 3 * nc)
    b1 = jnp.concatenate([params['conv_c_b'], params['conv_t_b']]
                         ).reshape(3, 1, c)
    b1_big = jnp.broadcast_to(b1, (3, n, c)).reshape(1, 3 * nc)

    # stage 2 affine params, flattened (node, channel).
    gamma = params['ln_w'].reshape(1, nc)
    beta = params['ln_b'].reshape(1, nc)

    # stage 3: 1x1 conv as a block-diagonal (n*c, n*c) matmul.
    w2t = params['cv2_w'][:, :, 0, 0].T                               # (i, o)
    w2_bd = jnp.einsum('ab,io->aibo', eye_n, w2t).reshape(nc, nc)
    b2_big = jnp.broadcast_to(params['cv2_b'][None, :], (n, c)).reshape(1, nc)

    # stage 4: fc (c -> 1) as a block (n*c, n) matmul.
    wfc = params['fc_w'][0, :, 0, 0]                                  # (c,)
    wfc_bd = jnp.einsum('ab,i->aib', eye_n, wfc).reshape(nc, n)
    bfc_big = jnp.full((1, n), params['fc_b'][0], jnp.float32)

    grid = (g_pad // block_g,)
    flops = 2 * g_pad * (nckt * 3 * nc + nc * nc + nc * n) + 12 * g_pad * nc
    transcendentals = g_pad * (2 * nc + 1)
    bytes_accessed = 4 * (xg.size + w1_big.size + w2_bd.size + wfc_bd.size
                          + 5 * nc + 2 * n + g_pad * n)

    out = pl.pallas_call(
        functools.partial(_fused_kernel, nc),
        out_shape=jax.ShapeDtypeStruct((g_pad, n), jnp.float32),
        grid=grid,
        in_specs=[
            pl.BlockSpec((block_g, nckt), lambda i: (i, 0)),   # xg (tiled rows)
            pl.BlockSpec((nckt, 3 * nc), lambda i: (0, 0)),    # w1_big
            pl.BlockSpec((1, 3 * nc), lambda i: (0, 0)),       # b1_big
            pl.BlockSpec((1, nc), lambda i: (0, 0)),           # gamma
            pl.BlockSpec((1, nc), lambda i: (0, 0)),           # beta
            pl.BlockSpec((nc, nc), lambda i: (0, 0)),          # w2_bd
            pl.BlockSpec((1, nc), lambda i: (0, 0)),           # b2_big
            pl.BlockSpec((nc, n), lambda i: (0, 0)),           # wfc_bd
            pl.BlockSpec((1, n), lambda i: (0, 0)),            # bfc
        ],
        out_specs=pl.BlockSpec((block_g, n), lambda i: (i, 0)),
        compiler_params=pltpu.CompilerParams(
            dimension_semantics=("parallel",),
            vmem_limit_bytes=32 * 1024 * 1024),
        cost_estimate=pl.CostEstimate(
            flops=int(flops), transcendentals=int(transcendentals),
            bytes_accessed=int(bytes_accessed)),
    )(xg, w1_big, b1_big, gamma, beta, w2_bd, b2_big, wfc_bd, bfc_big)

    out = out[:G].reshape(b, Tp, n)
    return out[:, None, :, :]                                   # (b, 1, Tp, n)


# ---------------------------------------------------------------------------
# Independent plain-JAX reference (direct translation of the PyTorch module).
# ---------------------------------------------------------------------------

def reference_forward(x, params, kt):
    b, c, T, n = x.shape
    Tp = T - kt + 1
    xl = jnp.transpose(x, (0, 2, 3, 1))                          # (b, T, n, c)
    taps = jnp.stack([xl[:, k:k + Tp] for k in range(kt)], axis=-1)
    wc = params['conv_c_w'][:, :, :, 0]                          # (c, c, kt)
    wt = params['conv_t_w'][:, :, :, 0]                          # (2c, c, kt)
    x_c = jnp.einsum('btnik,oik->btno', taps, wc) + params['conv_c_b']
    x_t = jnp.einsum('btnik,oik->btno', taps, wt) + params['conv_t_b']
    x_t1 = (x_t[..., :c] + x_c) * jax.nn.sigmoid(x_t[..., c:])   # (b,Tp,n,c)

    mu = jnp.mean(x_t1, axis=(2, 3), keepdims=True)
    var = jnp.mean((x_t1 - mu) ** 2, axis=(2, 3), keepdims=True)
    x_ln = ((x_t1 - mu) / jnp.sqrt(var + 1e-5)
            * params['ln_w'] + params['ln_b'])

    w2 = params['cv2_w'][:, :, 0, 0]                             # (o, i)
    x2 = jnp.einsum('btni,oi->btno', x_ln, w2) + params['cv2_b']
    x_t2 = jax.nn.sigmoid(x2 + x_ln)

    wfc = params['fc_w'][:, :, 0, 0]                             # (1, c)
    out = jnp.einsum('btni,oi->btno', x_t2, wfc) + params['fc_b']
    return jnp.transpose(out, (0, 3, 1, 2))                      # (b,1,Tp,n)


# ---------------------------------------------------------------------------
# Deterministic parameters matching the PyTorch module's shapes.
# ---------------------------------------------------------------------------

def init_params(key, c, kt, n):
    keys = jax.random.split(key, 10)

    def nrm(k, shape, s=0.1):
        return s * jax.random.normal(k, shape, jnp.float32)

    return {
        'conv_c_w': nrm(keys[0], (c, c, kt, 1)),
        'conv_c_b': nrm(keys[1], (c,)),
        'conv_t_w': nrm(keys[2], (2 * c, c, kt, 1)),
        'conv_t_b': nrm(keys[3], (2 * c,)),
        'ln_w':     1.0 + nrm(keys[4], (n, c)),
        'ln_b':     nrm(keys[5], (n, c)),
        'cv2_w':    nrm(keys[6], (c, c, 1, 1)),
        'cv2_b':    nrm(keys[7], (c,)),
        'fc_w':     nrm(keys[8], (1, c, 1, 1)),
        'fc_b':     nrm(keys[9], (1,)),
    }


# ---------------------------------------------------------------------------
if __name__ == "__main__":
    # small shapes consistent with Output_time_conv(c, timestep, n):
    # input x is (batch, c, T, n) with T >= timestep (kernel height).
    b, c, T, n = 4, 8, 16, 16
    kt = 9                     # `timestep` -> Tp = T - kt + 1 = 8
    Tp = T - kt + 1

    key = jax.random.PRNGKey(0)
    k_x, k_p = jax.random.split(key, 2)
    x = jax.random.normal(k_x, (b, c, T, n), jnp.float32)
    params = init_params(k_p, c, kt, n)

    out = output_time_conv_forward(x, params, kt)
    out = jax.block_until_ready(out)

    ref = jax.block_until_ready(reference_forward(x, params, kt))

    assert out.shape == (b, 1, Tp, n), out.shape
    assert bool(jnp.all(jnp.isfinite(out)))
    assert jnp.allclose(out, ref, atol=2e-2, rtol=2e-2), (
        float(jnp.max(jnp.abs(out - ref))))

    print("KERNEL_OK")
</pallas_src>

<mosaic_0001>
module attributes {stable_mosaic.version = 11 : i64} {
  func.func @_fused_kernel(%arg0: i32, %arg1: memref<8x1152xf32, #tpu.memory_space<vmem>>, %arg2: memref<1152x384xf32, #tpu.memory_space<vmem>>, %arg3: memref<1x384xf32, #tpu.memory_space<vmem>>, %arg4: memref<1x128xf32, #tpu.memory_space<vmem>>, %arg5: memref<1x128xf32, #tpu.memory_space<vmem>>, %arg6: memref<128x128xf32, #tpu.memory_space<vmem>>, %arg7: memref<1x128xf32, #tpu.memory_space<vmem>>, %arg8: memref<128x16xf32, #tpu.memory_space<vmem>>, %arg9: memref<1x16xf32, #tpu.memory_space<vmem>>, %arg10: memref<8x16xf32, #tpu.memory_space<vmem>>) attributes {dimension_semantics = [#tpu.dimension_semantics<parallel>], iteration_bounds = array<i64: 4>, scalar_prefetch = 0 : i64, scratch_operands = 0 : i64, tpu.core_type = #tpu.core_type<tc>, window_params = [{transform_indices = @transform_0, window_bounds = array<i64: 8, 1152>}, {pipeline_mode = #tpu.pipeline_mode<synchronous>, transform_indices = @transform_1, window_bounds = array<i64: 1152, 384>}, {pipeline_mode = #tpu.pipeline_mode<synchronous>, transform_indices = @transform_2, window_bounds = array<i64: 1, 384>}, {pipeline_mode = #tpu.pipeline_mode<synchronous>, transform_indices = @transform_3, window_bounds = array<i64: 1, 128>}, {pipeline_mode = #tpu.pipeline_mode<synchronous>, transform_indices = @transform_4, window_bounds = array<i64: 1, 128>}, {pipeline_mode = #tpu.pipeline_mode<synchronous>, transform_indices = @transform_5, window_bounds = array<i64: 128, 128>}, {pipeline_mode = #tpu.pipeline_mode<synchronous>, transform_indices = @transform_6, window_bounds = array<i64: 1, 128>}, {pipeline_mode = #tpu.pipeline_mode<synchronous>, transform_indices = @transform_7, window_bounds = array<i64: 128, 16>}, {pipeline_mode = #tpu.pipeline_mode<synchronous>, transform_indices = @transform_8, window_bounds = array<i64: 1, 16>}, {transform_indices = @transform_9, window_bounds = array<i64: 8, 16>}]} {
    %c0 = arith.constant 0 : index
    %c0_0 = arith.constant 0 : index
    %0 = vector.load %arg1[%c0, %c0_0] : memref<8x1152xf32, #tpu.memory_space<vmem>>, vector<8x1152xf32>
    %c0_1 = arith.constant 0 : index
    %c0_2 = arith.constant 0 : index
    %1 = vector.load %arg2[%c0_1, %c0_2] : memref<1152x384xf32, #tpu.memory_space<vmem>>, vector<1152x384xf32>
    %cst = arith.constant dense<0.000000e+00> : vector<8x384xf32>
    %2 = tpu.matmul %0, %1, %cst {dimension_numbers = #tpu.dot_dimension_numbers<[1], [0], [0], [1], [0, 0, 1, 1], [], []>} : vector<8x1152xf32>, vector<1152x384xf32>, vector<8x384xf32> -> vector<8x384xf32>
    %c0_3 = arith.constant 0 : index
    %c0_4 = arith.constant 0 : index
    %3 = vector.load %arg3[%c0_3, %c0_4] : memref<1x384xf32, #tpu.memory_space<vmem>>, vector<1x384xf32>
    %4 = vector.broadcast %3 : vector<1x384xf32> to vector<8x384xf32>
    %5 = arith.addf %2, %4 : vector<8x384xf32>
    %6 = vector.extract_strided_slice %5 {offsets = [0, 0], sizes = [8, 128], strides = [1, 1]} : vector<8x384xf32> to vector<8x128xf32>
    %7 = vector.extract_strided_slice %5 {offsets = [0, 128], sizes = [8, 128], strides = [1, 1]} : vector<8x384xf32> to vector<8x128xf32>
    %8 = vector.extract_strided_slice %5 {offsets = [0, 256], sizes = [8, 128], strides = [1, 1]} : vector<8x384xf32> to vector<8x128xf32>
    %9 = arith.addf %7, %6 : vector<8x128xf32>
    %10 = arith.negf %8 : vector<8x128xf32>
    %11 = math.exp %10 : vector<8x128xf32>
    %cst_5 = arith.constant 1.000000e+00 : f32
    %12 = vector.broadcast %cst_5 : f32 to vector<8x128xf32>
    %13 = arith.addf %12, %11 : vector<8x128xf32>
    %14 = arith.divf %12, %13 : vector<8x128xf32>
    %15 = arith.mulf %9, %14 : vector<8x128xf32>
    %cst_6 = arith.constant dense<0.000000e+00> : vector<8xf32>
    %16 = vector.multi_reduction <add>, %15, %cst_6 [1] : vector<8x128xf32> to vector<8xf32>
    %17 = vector.shape_cast %16 : vector<8xf32> to vector<8x1xf32>
    %cst_7 = arith.constant 1.280000e+02 : f32
    %18 = vector.broadcast %cst_7 : f32 to vector<8x1xf32>
    %19 = arith.divf %17, %18 : vector<8x1xf32>
    %20 = vector.broadcast %19 : vector<8x1xf32> to vector<8x128xf32>
    %21 = arith.subf %15, %20 : vector<8x128xf32>
    %22 = arith.mulf %21, %21 : vector<8x128xf32>
    %cst_8 = arith.constant dense<0.000000e+00> : vector<8xf32>
    %23 = vector.multi_reduction <add>, %22, %cst_8 [1] : vector<8x128xf32> to vector<8xf32>
    %24 = vector.shape_cast %23 : vector<8xf32> to vector<8x1xf32>
    %cst_9 = arith.constant 1.280000e+02 : f32
    %25 = vector.broadcast %cst_9 : f32 to vector<8x1xf32>
    %26 = arith.divf %24, %25 : vector<8x1xf32>
    %cst_10 = arith.constant 9.99999974E-6 : f32
    %27 = vector.broadcast %cst_10 : f32 to vector<8x1xf32>
    %28 = arith.addf %26, %27 : vector<8x1xf32>
    %29 = math.rsqrt %28 : vector<8x1xf32>
    %30 = vector.broadcast %29 : vector<8x1xf32> to vector<8x128xf32>
    %31 = arith.mulf %21, %30 : vector<8x128xf32>
    %c0_11 = arith.constant 0 : index
    %c0_12 = arith.constant 0 : index
    %32 = vector.load %arg4[%c0_11, %c0_12] : memref<1x128xf32, #tpu.memory_space<vmem>>, vector<1x128xf32>
    %33 = vector.broadcast %32 : vector<1x128xf32> to vector<8x128xf32>
    %34 = arith.mulf %31, %33 : vector<8x128xf32>
    %c0_13 = arith.constant 0 : index
    %c0_14 = arith.constant 0 : index
    %35 = vector.load %arg5[%c0_13, %c0_14] : memref<1x128xf32, #tpu.memory_space<vmem>>, vector<1x128xf32>
    %36 = vector.broadcast %35 : vector<1x128xf32> to vector<8x128xf32>
    %37 = arith.addf %34, %36 : vector<8x128xf32>
    %c0_15 = arith.constant 0 : index
    %c0_16 = arith.constant 0 : index
    %38 = vector.load %arg6[%c0_15, %c0_16] : memref<128x128xf32, #tpu.memory_space<vmem>>, vector<128x128xf32>
    %cst_17 = arith.constant dense<0.000000e+00> : vector<8x128xf32>
    %39 = tpu.matmul %37, %38, %cst_17 {dimension_numbers = #tpu.dot_dimension_numbers<[1], [0], [0], [1], [0, 0, 1, 1], [], []>} : vector<8x128xf32>, vector<128x128xf32>, vector<8x128xf32> -> vector<8x128xf32>
    %c0_18 = arith.constant 0 : index
    %c0_19 = arith.constant 0 : index
    %40 = vector.load %arg7[%c0_18, %c0_19] : memref<1x128xf32, #tpu.memory_space<vmem>>, vector<1x128xf32>
    %41 = vector.broadcast %40 : vector<1x128xf32> to vector<8x128xf32>
    %42 = arith.addf %39, %41 : vector<8x128xf32>
    %43 = arith.addf %42, %37 : vector<8x128xf32>
    %44 = arith.negf %43 : vector<8x128xf32>
    %45 = math.exp %44 : vector<8x128xf32>
    %cst_20 = arith.constant 1.000000e+00 : f32
    %46 = vector.broadcast %cst_20 : f32 to vector<8x128xf32>
    %47 = arith.addf %46, %45 : vector<8x128xf32>
    %48 = arith.divf %46, %47 : vector<8x128xf32>
    %c0_21 = arith.constant 0 : index
    %c0_22 = arith.constant 0 : index
    %49 = vector.load %arg8[%c0_21, %c0_22] : memref<128x16xf32, #tpu.memory_space<vmem>>, vector<128x16xf32>
    %cst_23 = arith.constant dense<0.000000e+00> : vector<8x16xf32>
    %50 = tpu.matmul %48, %49, %cst_23 {dimension_numbers = #tpu.dot_dimension_numbers<[1], [0], [0], [1], [0, 0, 1, 1], [], []>} : vector<8x128xf32>, vector<128x16xf32>, vector<8x16xf32> -> vector<8x16xf32>
    %c0_24 = arith.constant 0 : index
    %c0_25 = arith.constant 0 : index
    %51 = vector.load %arg9[%c0_24, %c0_25] : memref<1x16xf32, #tpu.memory_space<vmem>>, vector<1x16xf32>
    %52 = vector.broadcast %51 : vector<1x16xf32> to vector<8x16xf32>
    %53 = arith.addf %50, %52 : vector<8x16xf32>
    %c0_26 = arith.constant 0 : index
    %c0_27 = arith.constant 0 : index
    %54 = vector.load %arg10[%c0_26, %c0_27] : memref<8x16xf32, #tpu.memory_space<vmem>>, vector<8x16xf32>
    tpu.vector_store %arg10[%c0_26, %c0_27], %53 {strides = array<i32>} : memref<8x16xf32, #tpu.memory_space<vmem>>, vector<8x16xf32>,
    return
  }
  func.func @transform_0(%arg0: i32) -> (i32, i32) {
    %c0_i32 = arith.constant 0 : i32
    %c0_i32_0 = arith.constant 0 : i32
    return %arg0, %c0_i32 : i32, i32
  }
  func.func @transform_1(%arg0: i32) -> (i32, i32) {
    %c0_i32 = arith.constant 0 : i32
    %c0_i32_0 = arith.constant 0 : i32
    %c0_i32_1 = arith.constant 0 : i32
    return %c0_i32, %c0_i32_0 : i32, i32
  }
  func.func @transform_2(%arg0: i32) -> (i32, i32) {
    %c0_i32 = arith.constant 0 : i32
    %c0_i32_0 = arith.constant 0 : i32
    %c0_i32_1 = arith.constant 0 : i32
    return %c0_i32, %c0_i32_0 : i32, i32
  }
  func.func @transform_3(%arg0: i32) -> (i32, i32) {
    %c0_i32 = arith.constant 0 : i32
    %c0_i32_0 = arith.constant 0 : i32
    %c0_i32_1 = arith.constant 0 : i32
    return %c0_i32, %c0_i32_0 : i32, i32
  }
  func.func @transform_4(%arg0: i32) -> (i32, i32) {
    %c0_i32 = arith.constant 0 : i32
    %c0_i32_0 = arith.constant 0 : i32
    %c0_i32_1 = arith.constant 0 : i32
    return %c0_i32, %c0_i32_0 : i32, i32
  }
  func.func @transform_5(%arg0: i32) -> (i32, i32) {
    %c0_i32 = arith.constant 0 : i32
    %c0_i32_0 = arith.constant 0 : i32
    %c0_i32_1 = arith.constant 0 : i32
    return %c0_i32, %c0_i32_0 : i32, i32
  }
  func.func @transform_6(%arg0: i32) -> (i32, i32) {
    %c0_i32 = arith.constant 0 : i32
    %c0_i32_0 = arith.constant 0 : i32
    %c0_i32_1 = arith.constant 0 : i32
    return %c0_i32, %c0_i32_0 : i32, i32
  }
  func.func @transform_7(%arg0: i32) -> (i32, i32) {
    %c0_i32 = arith.constant 0 : i32
    %c0_i32_0 = arith.constant 0 : i32
    %c0_i32_1 = arith.constant 0 : i32
    return %c0_i32, %c0_i32_0 : i32, i32
  }
  func.func @transform_8(%arg0: i32) -> (i32, i32) {
    %c0_i32 = arith.constant 0 : i32
    %c0_i32_0 = arith.constant 0 : i32
    %c0_i32_1 = arith.constant 0 : i32
    return %c0_i32, %c0_i32_0 : i32, i32
  }
  func.func @transform_9(%arg0: i32) -> (i32, i32) {
    %c0_i32 = arith.constant 0 : i32
    %c0_i32_0 = arith.constant 0 : i32
    return %arg0, %c0_i32 : i32, i32
  }
}

</mosaic_0001>

<llo_original>
// kernel: tpu_custom_call.1
$region0: #{tpu_custom_call.1}
  #allocation0 [shape = 'u32[]', space=smem, size = 0x4, offset = 0x4, fixed_abs, tag = 'smem constant byte address 0x4 - core index']
  #allocation1 [shape = 'u32[144,128]{1,0:T(1,128)}', space=vmem, size = 0x12000, scoped, tag = 'internal scratch']
  %s0 = inlined_call_operand.hbm [shape: f32[32,1152], index: 0, kind: input, shape index: {}]
  %s1 = inlined_call_operand.hbm [shape: f32[1152,384], index: 1, kind: input, shape index: {}]
  %s2 = inlined_call_operand.hbm [shape: f32[1,384], index: 2, kind: input, shape index: {}]
  %s3 = inlined_call_operand.hbm [shape: f32[1,128], index: 3, kind: input, shape index: {}]
  %s4 = inlined_call_operand.hbm [shape: f32[1,128], index: 4, kind: input, shape index: {}]
  %s5 = inlined_call_operand.hbm [shape: f32[128,128], index: 5, kind: input, shape index: {}]
  %s6 = inlined_call_operand.hbm [shape: f32[1,128], index: 6, kind: input, shape index: {}]
  %s7 = inlined_call_operand.vmem [shape: f32[128,16], index: 7, kind: input, shape index: {}]
  %s8 = inlined_call_operand.hbm [shape: f32[1,16], index: 8, kind: input, shape index: {}]
  %s9 = inlined_call_operand.vmem [shape: f32[32,16], index: 9, kind: output, shape index: {}]
  %s10 = sld [smem:[#allocation0]]
  $region101: #{tpu_custom_call.1} parent=0
    _
  %s12 = ssub.s32 1, %s10
  %s13 = scalar_select 0, %s12, %s10
  $region1: #{tpu_custom_call.1} parent=0
    #allocation2 [shape = 'u8[73728]{0}', space=vmem, size = 0x12000, scoped, tag = 'input window, operand 0']
    #allocation3 [shape = 's32[2]{0}', space=sflag, size = 0x8, scoped, tag = 'scoped memory for tpu_custom_call.1']
    #allocation4 [shape = 'u8[1769472]{0}', space=vmem, size = 0x1b0000, scoped, tag = 'input window, operand 1, single buffered']
    #allocation5 [shape = 's32[1]{0}', space=sflag, size = 0x4, scoped, tag = 'scoped memory for tpu_custom_call.1']
    #allocation6 [shape = 'u8[1536]{0}', space=vmem, size = 0x800, scoped, tag = 'input window, operand 2, single buffered']
    #allocation7 [shape = 'u8[512]{0}', space=vmem, size = 0x400, scoped, tag = 'input window, operand 3, single buffered']
    #allocation8 [shape = 's32[1]{0}', space=sflag, size = 0x4, scoped, tag = 'scoped memory for tpu_custom_call.1']
    #allocation9 [shape = 'u8[512]{0}', space=vmem, size = 0x400, scoped, tag = 'input window, operand 4, single buffered']
    #allocation10 [shape = 'u8[65536]{0}', space=vmem, size = 0x10000, scoped, tag = 'input window, operand 5, single buffered']
    #allocation11 [shape = 's32[1]{0}', space=sflag, size = 0x4, scoped, tag = 'scoped memory for tpu_custom_call.1']
    #allocation12 [shape = 'u8[512]{0}', space=vmem, size = 0x400, scoped, tag = 'input window, operand 6, single buffered']
    #allocation13 [shape = 'u8[512]{0}', space=vmem, size = 0x400, scoped, tag = 'input window, operand 8, single buffered']
    #allocation14 [shape = 's32[1]{0}', space=sflag, size = 0x4, scoped, tag = 'scoped memory for tpu_custom_call.1']
    %14 = vsyncpa [#allocation3], 0
    %s15 = scalar_lea.sflag [#allocation3], 1
    %16 = vsyncpa %s15, 0
    %17 = vsyncpa [#allocation5], 0
    %18 = vsyncpa [#allocation8], 0
    %19 = vsyncpa [#allocation11], 0
    %20 = vsyncpa [#allocation14], 0
    loop: start=0, step=1, limit=6
    $region2: #{tpu_custom_call.1} parent=1 // loop_pre_header
      _
    $region3: #{tpu_custom_call.1} parent=1 // loop_header
      %s22 = sphi 0, %s26
      %p23 = scmp.ge.s32.totalorder %s22, 6
      %s32 = sphi 0, %s34
      %s35 = sphi 0, %s32
      %s36 = sphi 0, %s35
      %s52 = sphi 0, %s36
      %s56 = sphi 0, %s56
      %s58 = sphi 0, %s56
      %s59 = sphi 0, %s58
      %s73 = sphi 0, %s59
      %s77 = sphi 0, %s77
      %s79 = sphi 0, %s77
      %s80 = sphi 0, %s79
      %s94 = sphi 0, %s80
      %s98 = sphi 0, %s98
      %s100 = sphi 0, %s98
      %s101 = sphi 0, %s100
      %s115 = sphi 0, %s101
      %s119 = sphi 0, %s119
      %s121 = sphi 0, %s119
      %s122 = sphi 0, %s121
      %s136 = sphi 0, %s122
      %s140 = sphi 0, %s140
      %s142 = sphi 0, %s140
      %s143 = sphi 0, %s142
      %s157 = sphi 0, %s143
      %s161 = sphi 0, %s161
      %s163 = sphi 0, %s161
      %s164 = sphi 0, %s163
      %s178 = sphi 0, %s164
      %s182 = sphi 0, %s182
      %s184 = sphi 0, %s182
      %s185 = sphi 0, %s184
      %s199 = sphi 0, %s185
      %s203 = sphi 0, %s203
      %s205 = sphi 0, %s203
      %s206 = sphi 0, %s205
      %s220 = sphi 0, %s206
      %s226 = sphi 0, %s228
      %s229 = sphi 0, %s226
      %s230 = sphi 0, %s229
      %s246 = sphi 0, %s230
    $region4: #{tpu_custom_call.1} parent=1 // loop_header_branch
      %25 = sbr.rel (%p23) target = $region8
    $region5: #{tpu_custom_call.1} parent=1 // loop_body
      %s27 = ssub.s32 %s22, 1
      %s28 = ssub.s32 %s22, 2
      %s29 = sadd.s32 %s22, 1
      %s30 = ssub.s32 %s22, %s29
      %p31 = scmp.eq.s32.totalorder %s30, 0
      %s33 = sadd.s32 %s32, 1
      %s34 = scalar_select %p31, %s32, %s33
      %p37 = pneg %p31
      %p38 = scmp.eq.s32.totalorder %s22, 3
      %p39 = por %p37, %p38
      %p40 = scmp.ne.s32.totalorder %s32, %s35
      %p41 = scmp.eq.s32.totalorder %s22, 0
      %p42 = por %p40, %p41
      %p43 = scmp.ne.s32.totalorder %s32, %s35
      %p44 = scmp.eq.s32.totalorder %s27, 3
      %p45 = por %p43, %p44
      %p46 = scmp.ne.s32.totalorder %s35, %s36
      %p47 = scmp.eq.s32.totalorder %s27, 0
      %p48 = por %p46, %p47
      %p49 = scmp.ne.s32.totalorder %s35, %s36
      %p50 = scmp.eq.s32.totalorder %s28, 3
      %p51 = por %p49, %p50
      %p53 = scmp.ne.s32.totalorder %s36, %s52
      %p54 = scmp.eq.s32.totalorder %s28, 0
      %p55 = por %p53, %p54
      %s57 = sadd.s32 %s56, 1
      %p60 = scmp.eq.s32.totalorder %s22, 3
      %p61 = scmp.ne.s32.totalorder %s56, %s58
      %p62 = scmp.eq.s32.totalorder %s22, 0
      %p63 = por %p61, %p62
      %p64 = scmp.ne.s32.totalorder %s56, %s58
      %p65 = scmp.eq.s32.totalorder %s27, 3
      %p66 = por %p64, %p65
      %p67 = scmp.ne.s32.totalorder %s58, %s59
      %p68 = scmp.eq.s32.totalorder %s27, 0
      %p69 = por %p67, %p68
      %p70 = scmp.ne.s32.totalorder %s58, %s59
      %p71 = scmp.eq.s32.totalorder %s28, 3
      %p72 = por %p70, %p71
      %p74 = scmp.ne.s32.totalorder %s59, %s73
      %p75 = scmp.eq.s32.totalorder %s28, 0
      %p76 = por %p74, %p75
      %s78 = sadd.s32 %s77, 1
      %p81 = scmp.eq.s32.totalorder %s22, 3
      %p82 = scmp.ne.s32.totalorder %s77, %s79
      %p83 = scmp.eq.s32.totalorder %s22, 0
      %p84 = por %p82, %p83
      %p85 = scmp.ne.s32.totalorder %s77, %s79
      %p86 = scmp.eq.s32.totalorder %s27, 3
      %p87 = por %p85, %p86
      %p88 = scmp.ne.s32.totalorder %s79, %s80
      %p89 = scmp.eq.s32.totalorder %s27, 0
      %p90 = por %p88, %p89
      %p91 = scmp.ne.s32.totalorder %s79, %s80
      %p92 = scmp.eq.s32.totalorder %s28, 3
      %p93 = por %p91, %p92
      %p95 = scmp.ne.s32.totalorder %s80, %s94
      %p96 = scmp.eq.s32.totalorder %s28, 0
      %p97 = por %p95, %p96
      %s99 = sadd.s32 %s98, 1
      %p102 = scmp.eq.s32.totalorder %s22, 3
      %p103 = scmp.ne.s32.totalorder %s98, %s100
      %p104 = scmp.eq.s32.totalorder %s22, 0
      %p105 = por %p103, %p104
      %p106 = scmp.ne.s32.totalorder %s98, %s100
      %p107 = scmp.eq.s32.totalorder %s27, 3
      %p108 = por %p106, %p107
      %p109 = scmp.ne.s32.totalorder %s100, %s101
      %p110 = scmp.eq.s32.totalorder %s27, 0
      %p111 = por %p109, %p110
      %p112 = scmp.ne.s32.totalorder %s100, %s101
      %p113 = scmp.eq.s32.totalorder %s28, 3
      %p114 = por %p112, %p113
      %p116 = scmp.ne.s32.totalorder %s101, %s115
      %p117 = scmp.eq.s32.totalorder %s28, 0
      %p118 = por %p116, %p117
      %s120 = sadd.s32 %s119, 1
      %p123 = scmp.eq.s32.totalorder %s22, 3
      %p124 = scmp.ne.s32.totalorder %s119, %s121
      %p125 = scmp.eq.s32.totalorder %s22, 0
      %p126 = por %p124, %p125
      %p127 = scmp.ne.s32.totalorder %s119, %s121
      %p128 = scmp.eq.s32.totalorder %s27, 3
      %p129 = por %p127, %p128
      %p130 = scmp.ne.s32.totalorder %s121, %s122
      %p131 = scmp.eq.s32.totalorder %s27, 0
      %p132 = por %p130, %p131
      %p133 = scmp.ne.s32.totalorder %s121, %s122
      %p134 = scmp.eq.s32.totalorder %s28, 3
      %p135 = por %p133, %p134
      %p137 = scmp.ne.s32.totalorder %s122, %s136
      %p138 = scmp.eq.s32.totalorder %s28, 0
      %p139 = por %p137, %p138
      %s141 = sadd.s32 %s140, 1
      %p144 = scmp.eq.s32.totalorder %s22, 3
      %p145 = scmp.ne.s32.totalorder %s140, %s142
      %p146 = scmp.eq.s32.totalorder %s22, 0
      %p147 = por %p145, %p146
      %p148 = scmp.ne.s32.totalorder %s140, %s142
      %p149 = scmp.eq.s32.totalorder %s27, 3
      %p150 = por %p148, %p149
      %p151 = scmp.ne.s32.totalorder %s142, %s143
      %p152 = scmp.eq.s32.totalorder %s27, 0
      %p153 = por %p151, %p152
      %p154 = scmp.ne.s32.totalorder %s142, %s143
      %p155 = scmp.eq.s32.totalorder %s28, 3
      %p156 = por %p154, %p155
      %p158 = scmp.ne.s32.totalorder %s143, %s157
      %p159 = scmp.eq.s32.totalorder %s28, 0
      %p160 = por %p158, %p159
      %s162 = sadd.s32 %s161, 1
      %p165 = scmp.eq.s32.totalorder %s22, 3
      %p166 = scmp.ne.s32.totalorder %s161, %s163
      %p167 = scmp.eq.s32.totalorder %s22, 0
      %p168 = por %p166, %p167
      %p169 = scmp.ne.s32.totalorder %s161, %s163
      %p170 = scmp.eq.s32.totalorder %s27, 3
      %p171 = por %p169, %p170
      %p172 = scmp.ne.s32.totalorder %s163, %s164
      %p173 = scmp.eq.s32.totalorder %s27, 0
      %p174 = por %p172, %p173
      %p175 = scmp.ne.s32.totalorder %s163, %s164
      %p176 = scmp.eq.s32.totalorder %s28, 3
      %p177 = por %p175, %p176
      %p179 = scmp.ne.s32.totalorder %s164, %s178
      %p180 = scmp.eq.s32.totalorder %s28, 0
      %p181 = por %p179, %p180
      %s183 = sadd.s32 %s182, 1
      %p186 = scmp.eq.s32.totalorder %s22, 3
      %p187 = scmp.ne.s32.totalorder %s182, %s184
      %p188 = scmp.eq.s32.totalorder %s22, 0
      %p189 = por %p187, %p188
      %p190 = scmp.ne.s32.totalorder %s182, %s184
      %p191 = scmp.eq.s32.totalorder %s27, 3
      %p192 = por %p190, %p191
      %p193 = scmp.ne.s32.totalorder %s184, %s185
      %p194 = scmp.eq.s32.totalorder %s27, 0
      %p195 = por %p193, %p194
      %p196 = scmp.ne.s32.totalorder %s184, %s185
      %p197 = scmp.eq.s32.totalorder %s28, 3
      %p198 = por %p196, %p197
      %p200 = scmp.ne.s32.totalorder %s185, %s199
      %p201 = scmp.eq.s32.totalorder %s28, 0
      %p202 = por %p200, %p201
      %s204 = sadd.s32 %s203, 1
      %p207 = scmp.eq.s32.totalorder %s22, 3
      %p208 = scmp.ne.s32.totalorder %s203, %s205
      %p209 = scmp.eq.s32.totalorder %s22, 0
      %p210 = por %p208, %p209
      %p211 = scmp.ne.s32.totalorder %s203, %s205
      %p212 = scmp.eq.s32.totalorder %s27, 3
      %p213 = por %p211, %p212
      %p214 = scmp.ne.s32.totalorder %s205, %s206
      %p215 = scmp.eq.s32.totalorder %s27, 0
      %p216 = por %p214, %p215
      %p217 = scmp.ne.s32.totalorder %s205, %s206
      %p218 = scmp.eq.s32.totalorder %s28, 3
      %p219 = por %p217, %p218
      %p221 = scmp.ne.s32.totalorder %s206, %s220
      %p222 = scmp.eq.s32.totalorder %s28, 0
      %p223 = por %p221, %p222
      %s224 = ssub.s32 %s22, %s29
      %p225 = scmp.eq.s32.totalorder %s224, 0
      %s227 = sadd.s32 %s226, 1
      %s228 = scalar_select %p225, %s226, %s227
      %p231 = pneg %p225
      %p232 = scmp.eq.s32.totalorder %s22, 3
      %p233 = por %p231, %p232
      %p234 = scmp.ne.s32.totalorder %s226, %s229
      %p235 = scmp.eq.s32.totalorder %s22, 0
      %p236 = por %p234, %p235
      %p237 = scmp.ne.s32.totalorder %s226, %s229
      %p238 = scmp.eq.s32.totalorder %s27, 3
      %p239 = por %p237, %p238
      %p240 = scmp.ne.s32.totalorder %s229, %s230
      %p241 = scmp.eq.s32.totalorder %s27, 0
      %p242 = por %p240, %p241
      %p243 = scmp.ne.s32.totalorder %s229, %s230
      %p244 = scmp.eq.s32.totalorder %s28, 3
      %p245 = por %p243, %p244
      %p247 = scmp.ne.s32.totalorder %s230, %s246
      %p248 = scmp.eq.s32.totalorder %s28, 0
      %p249 = por %p247, %p248
      %p250 = scmp.le.s32.totalorder 1, %s22
      %p251 = scmp.lt.s32.totalorder %s22, 5
      %p252 = pnand %p250, %p251
      %p253 = pneg %p252
      // Predicated region
      $region9: #{tpu_custom_call.1} parent=5 // pred_check
        _
      $region10: #{tpu_custom_call.1} parent=5 // pred_check_branch
        %255 = sbr.rel (%p252) target = $region12
      $region11: #{tpu_custom_call.1} parent=5 // pred_region
        %s256 = ssub.s32 %s22, 1
        // Predicated region
        $region13: #{tpu_custom_call.1} parent=11 // pred_check
          %p257 = pneg %p69
        $region14: #{tpu_custom_call.1} parent=11 // pred_check_branch
          %259 = sbr.rel (%p257) target = $region16
        $region15: #{tpu_custom_call.1} parent=11 // pred_region
          %s261 = ssub.s32 55296, 55296
          %262 = vsyncadd [#allocation5], %s261
          %s263 = sshll.u32 [#allocation4], 4
          %s264 = int_to_ptr.vmem [resolvable:$true] %s263
          %269 = dma.hbm_to_vmem [thread:$0]  %s1, 55296, %s264, [#allocation5], 384, 384, 24
        $region16: #{tpu_custom_call.1} parent=11 // pred_fallthru
          _
        // Predicated region
        $region17: #{tpu_custom_call.1} parent=11 // pred_check
          %p270 = pneg %p90
        $region18: #{tpu_custom_call.1} parent=11 // pred_check_branch
          %272 = sbr.rel (%p270) target = $region20
        $region19: #{tpu_custom_call.1} parent=11 // pred_region
          %s274 = ssub.s32 48, 48
          %275 = vsyncadd [#allocation5], %s274
          %s277 = sshll.u32 [#allocation6], 4
          %s278 = int_to_ptr.vmem [resolvable:$true] %s277
          %280 = dma.hbm_to_vmem [thread:$0]  %s2, 48, %s278, [#allocation5]
        $region20: #{tpu_custom_call.1} parent=11 // pred_fallthru
          _
        // Predicated region
        $region21: #{tpu_custom_call.1} parent=11 // pred_check
          %p281 = pneg %p111
        $region22: #{tpu_custom_call.1} parent=11 // pred_check_branch
          %283 = sbr.rel (%p281) target = $region24
        $region23: #{tpu_custom_call.1} parent=11 // pred_region
          %s285 = ssub.s32 16, 16
          %286 = vsyncadd [#allocation8], %s285
          %s288 = sshll.u32 [#allocation7], 4
          %s289 = int_to_ptr.vmem [resolvable:$true] %s288
          %291 = dma.hbm_to_vmem [thread:$0]  %s3, 16, %s289, [#allocation8]
        $region24: #{tpu_custom_call.1} parent=11 // pred_fallthru
          _
        // Predicated region
        $region25: #{tpu_custom_call.1} parent=11 // pred_check
          %p292 = pneg %p132
        $region26: #{tpu_custom_call.1} parent=11 // pred_check_branch
          %294 = sbr.rel (%p292) target = $region28
        $region27: #{tpu_custom_call.1} parent=11 // pred_region
          %s296 = ssub.s32 16, 16
          %297 = vsyncadd [#allocation8], %s296
          %s299 = sshll.u32 [#allocation9], 4
          %s300 = int_to_ptr.vmem [resolvable:$true] %s299
          %302 = dma.hbm_to_vmem [thread:$0]  %s4, 16, %s300, [#allocation8]
        $region28: #{tpu_custom_call.1} parent=11 // pred_fallthru
          _
        // Predicated region
        $region29: #{tpu_custom_call.1} parent=11 // pred_check
          %p303 = pneg %p153
        $region30: #{tpu_custom_call.1} parent=11 // pred_check_branch
          %305 = sbr.rel (%p303) target = $region32
        $region31: #{tpu_custom_call.1} parent=11 // pred_region
          %s307 = ssub.s32 2048, 2048
          %308 = vsyncadd [#allocation11], %s307
          %s309 = sshll.u32 [#allocation10], 4
          %s310 = int_to_ptr.vmem [resolvable:$true] %s309
          %315 = dma.hbm_to_vmem [thread:$0]  %s5, 2048, %s310, [#allocation11], 128, 128, 8
        $region32: #{tpu_custom_call.1} parent=11 // pred_fallthru
          _
        // Predicated region
        $region33: #{tpu_custom_call.1} parent=11 // pred_check
          %p316 = pneg %p174
        $region34: #{tpu_custom_call.1} parent=11 // pred_check_branch
          %318 = sbr.rel (%p316) target = $region36
        $region35: #{tpu_custom_call.1} parent=11 // pred_region
          %s320 = ssub.s32 16, 16
          %321 = vsyncadd [#allocation11], %s320
          %s323 = sshll.u32 [#allocation12], 4
          %s324 = int_to_ptr.vmem [resolvable:$true] %s323
          %326 = dma.hbm_to_vmem [thread:$0]  %s6, 16, %s324, [#allocation11]
        $region36: #{tpu_custom_call.1} parent=11 // pred_fallthru
          _
        // Predicated region
        $region37: #{tpu_custom_call.1} parent=11 // pred_check
          %p327 = pneg %p195
        $region38: #{tpu_custom_call.1} parent=11 // pred_check_branch
          %329 = sbr.rel (%p327) target = $region40
        $region39: #{tpu_custom_call.1} parent=11 // pred_region
          _
        $region40: #{tpu_custom_call.1} parent=11 // pred_fallthru
          _
        // Predicated region
        $region41: #{tpu_custom_call.1} parent=11 // pred_check
          %p330 = pneg %p216
        $region42: #{tpu_custom_call.1} parent=11 // pred_check_branch
          %332 = sbr.rel (%p330) target = $region44
        $region43: #{tpu_custom_call.1} parent=11 // pred_region
          %s334 = ssub.s32 16, 16
          %335 = vsyncadd [#allocation14], %s334
          %s337 = sshll.u32 [#allocation13], 4
          %s338 = int_to_ptr.vmem [resolvable:$true] %s337
          %340 = dma.hbm_to_vmem [thread:$0]  %s8, 16, %s338, [#allocation14]
        $region44: #{tpu_custom_call.1} parent=11 // pred_fallthru
          _
      $region12: #{tpu_custom_call.1} parent=5 // pred_fallthru
        _
      %p341 = scmp.lt.s32.totalorder %s22, 4
      // Predicated region
      $region45: #{tpu_custom_call.1} parent=5 // pred_check
        %p342 = pneg %p341
      $region46: #{tpu_custom_call.1} parent=5 // pred_check_branch
        %344 = sbr.rel (%p342) target = $region48
      $region47: #{tpu_custom_call.1} parent=5 // pred_region
        // Predicated region
        $region49: #{tpu_custom_call.1} parent=47 // pred_check
          %p345 = pneg %p42
        $region50: #{tpu_custom_call.1} parent=47 // pred_check_branch
          %347 = sbr.rel (%p345) target = $region52
        $region51: #{tpu_custom_call.1} parent=47 // pred_region
          %s348 = sand.u32 %s32, 1
          %s349 = scalar_lea.sflag [#allocation3], %s348
          %s350 = sand.u32 %s32, 1
          %s351 = smul.addr %s350, 72
          %s352 = scalar_lea.vmem [#allocation2], %s351
          %s354 = ssub.s32 1152, 1152
          %355 = vsyncadd %s349, %s354
          %s356 = smul.addr %s22, 9
          %s357 = smul.addr %s356, 128
          %s358 = scalar_lea.hbm %s0, %s357
          %s360 = sshll.u32 %s352, 4
          %s361 = int_to_ptr.vmem [resolvable:$true] %s360
          %363 = dma.hbm_to_vmem [thread:$0]  %s358, 1152, %s361, %s349
        $region52: #{tpu_custom_call.1} parent=47 // pred_fallthru
          _
      $region48: #{tpu_custom_call.1} parent=5 // pred_fallthru
        _
      %p364 = scmp.le.s32.totalorder 1, %s22
      %p365 = scmp.lt.s32.totalorder %s22, 5
      %p366 = pnand %p364, %p365
      %p367 = pneg %p366
      // Predicated region
      $region53: #{tpu_custom_call.1} parent=5 // pred_check
        _
      $region54: #{tpu_custom_call.1} parent=5 // pred_check_branch
        %369 = sbr.rel (%p366) target = $region56
      $region55: #{tpu_custom_call.1} parent=5 // pred_region
        %s370 = ssub.s32 %s22, 1
        %s371 = sand.u32 %s35, 1
        %s372 = scalar_lea.sflag [#allocation3], %s371
        %s373 = sand.u32 %s35, 1
        %s374 = smul.addr %s373, 72
        %s375 = scalar_lea.vmem [#allocation2], %s374
        // Predicated region
        $region57: #{tpu_custom_call.1} parent=55 // pred_check
          %p376 = pneg %p48
        $region58: #{tpu_custom_call.1} parent=55 // pred_check_branch
          %378 = sbr.rel (%p376) target = $region60
        $region59: #{tpu_custom_call.1} parent=55 // pred_region
          %379 = dma.done %s372, 1152
        $region60: #{tpu_custom_call.1} parent=55 // pred_fallthru
          _
        // Predicated region
        $region61: #{tpu_custom_call.1} parent=55 // pred_check
          %p380 = pneg %p69
        $region62: #{tpu_custom_call.1} parent=55 // pred_check_branch
          %382 = sbr.rel (%p380) target = $region64
        $region63: #{tpu_custom_call.1} parent=55 // pred_region
          %383 = dma.done [#allocation5], 55296
        $region64: #{tpu_custom_call.1} parent=55 // pred_fallthru
          _
        // Predicated region
        $region65: #{tpu_custom_call.1} parent=55 // pred_check
          %p384 = pneg %p90
        $region66: #{tpu_custom_call.1} parent=55 // pred_check_branch
          %386 = sbr.rel (%p384) target = $region68
        $region67: #{tpu_custom_call.1} parent=55 // pred_region
          %387 = dma.done [#allocation5], 48
        $region68: #{tpu_custom_call.1} parent=55 // pred_fallthru
          _
        // Predicated region
        $region69: #{tpu_custom_call.1} parent=55 // pred_check
          %p388 = pneg %p111
        $region70: #{tpu_custom_call.1} parent=55 // pred_check_branch
          %390 = sbr.rel (%p388) target = $region72
        $region71: #{tpu_custom_call.1} parent=55 // pred_region
          %391 = dma.done [#allocation8], 16
        $region72: #{tpu_custom_call.1} parent=55 // pred_fallthru
          _
        // Predicated region
        $region73: #{tpu_custom_call.1} parent=55 // pred_check
          %p392 = pneg %p132
        $region74: #{tpu_custom_call.1} parent=55 // pred_check_branch
          %394 = sbr.rel (%p392) target = $region76
        $region75: #{tpu_custom_call.1} parent=55 // pred_region
          %395 = dma.done [#allocation8], 16
        $region76: #{tpu_custom_call.1} parent=55 // pred_fallthru
          _
        // Predicated region
        $region77: #{tpu_custom_call.1} parent=55 // pred_check
          %p396 = pneg %p153
        $region78: #{tpu_custom_call.1} parent=55 // pred_check_branch
          %398 = sbr.rel (%p396) target = $region80
        $region79: #{tpu_custom_call.1} parent=55 // pred_region
          %399 = dma.done [#allocation11], 2048
        $region80: #{tpu_custom_call.1} parent=55 // pred_fallthru
          _
        // Predicated region
        $region81: #{tpu_custom_call.1} parent=55 // pred_check
          %p400 = pneg %p174
        $region82: #{tpu_custom_call.1} parent=55 // pred_check_branch
          %402 = sbr.rel (%p400) target = $region84
        $region83: #{tpu_custom_call.1} parent=55 // pred_region
          %403 = dma.done [#allocation11], 16
        $region84: #{tpu_custom_call.1} parent=55 // pred_fallthru
          _
        // Predicated region
        $region85: #{tpu_custom_call.1} parent=55 // pred_check
          %p404 = pneg %p216
        $region86: #{tpu_custom_call.1} parent=55 // pred_check_branch
          %406 = sbr.rel (%p404) target = $region88
        $region87: #{tpu_custom_call.1} parent=55 // pred_region
          %407 = dma.done [#allocation14], 16
        $region88: #{tpu_custom_call.1} parent=55 // pred_fallthru
          _
        %s408 = sand.u32 %s35, 1
        %s409 = scalar_lea.sflag [#allocation3], %s408
        %s410 = sand.u32 %s35, 1
        %s411 = smul.addr %s410, 72
        %s412 = scalar_lea.vmem [#allocation2], %s411
        %p413 = pneg %p48
        %p414 = pneg %p45
        %p415 = pneg %p69
        %p416 = pneg %p66
        %p417 = pneg %p90
        %p418 = pneg %p87
        %p419 = pneg %p111
        %p420 = pneg %p108
        %p421 = pneg %p132
        %p422 = pneg %p129
        %p423 = pneg %p153
        %p424 = pneg %p150
        %p425 = pneg %p174
        %p426 = pneg %p171
        %p427 = pneg %p195
        %p428 = pneg %p192
        %p429 = pneg %p216
        %p430 = pneg %p213
        %p431 = pneg %p242
        %p432 = pneg %p239
        %p433 = scmp.lt.s32.totalorder %s27, 3
        %s434 = scalar_select %p433, %s27, 3
        %s435 = smul.addr %s434, 8
        %s436 = scalar_lea.vmem %s9, %s435
        %p437 = scmp.lt.s32.totalorder %s27, 3
        %s438 = scalar_select %p437, %s27, 3
        %s439 = smul.addr %s438, 8
        %s440 = scalar_lea.vmem %s9, %s439
        %v441 = vld [vmem:[%s375] sm:$0xff]
        %v442 = vld [vmem:[%s375 + $0x8] sm:$0xff]
        %v443 = vld [vmem:[%s375 + $0x10] sm:$0xff]
        %v444 = vld [vmem:[%s375 + $0x18] sm:$0xff]
        %v445 = vld [vmem:[%s375 + $0x20] sm:$0xff]
        %v446 = vld [vmem:[%s375 + $0x28] sm:$0xff]
        %v447 = vld [vmem:[%s375 + $0x30] sm:$0xff]
        %v448 = vld [vmem:[%s375 + $0x38] sm:$0xff]
        %v449 = vld [vmem:[%s375 + $0x40] sm:$0xff]
        %v450 = vld [vmem:[#allocation4] sm:$0xff]
        %v451 = vld [vmem:[#allocation4 + $0x8] sm:$0xff]
        %v452 = vld [vmem:[#allocation4 + $0x10] sm:$0xff]
        %v453 = vld [vmem:[#allocation4 + $0x18] sm:$0xff]
        %v454 = vld [vmem:[#allocation4 + $0x20] sm:$0xff]
        %v455 = vld [vmem:[#allocation4 + $0x28] sm:$0xff]
        %v456 = vld [vmem:[#allocation4 + $0x30] sm:$0xff]
        %v457 = vld [vmem:[#allocation4 + $0x38] sm:$0xff]
        %v458 = vld [vmem:[#allocation4 + $0x40] sm:$0xff]
        %v459 = vld [vmem:[#allocation4 + $0x48] sm:$0xff]
        %v460 = vld [vmem:[#allocation4 + $0x50] sm:$0xff]
        %v461 = vld [vmem:[#allocation4 + $0x58] sm:$0xff]
        %v462 = vld [vmem:[#allocation4 + $0x60] sm:$0xff]
        %v463 = vld [vmem:[#allocation4 + $0x68] sm:$0xff]
        %v464 = vld [vmem:[#allocation4 + $0x70] sm:$0xff]
        %v465 = vld [vmem:[#allocation4 + $0x78] sm:$0xff]
        %v466 = vld [vmem:[#allocation4 + $0x80] sm:$0xff]
        %v467 = vld [vmem:[#allocation4 + $0x88] sm:$0xff]
        %v468 = vld [vmem:[#allocation4 + $0x90] sm:$0xff]
        %v469 = vld [vmem:[#allocation4 + $0x98] sm:$0xff]
        %v470 = vld [vmem:[#allocation4 + $0xa0] sm:$0xff]
        %v471 = vld [vmem:[#allocation4 + $0xa8] sm:$0xff]
        %v472 = vld [vmem:[#allocation4 + $0xb0] sm:$0xff]
        %v473 = vld [vmem:[#allocation4 + $0xb8] sm:$0xff]
        %v474 = vld [vmem:[#allocation4 + $0xc0] sm:$0xff]
        %v475 = vld [vmem:[#allocation4 + $0xc8] sm:$0xff]
        %v476 = vld [vmem:[#allocation4 + $0xd0] sm:$0xff]
        %v477 = vld [vmem:[#allocation4 + $0xd8] sm:$0xff]
        %v478 = vld [vmem:[#allocation4 + $0xe0] sm:$0xff]
        %v479 = vld [vmem:[#allocation4 + $0xe8] sm:$0xff]
        %v480 = vld [vmem:[#allocation4 + $0xf0] sm:$0xff]
        %v481 = vld [vmem:[#allocation4 + $0xf8] sm:$0xff]
        %v482 = vld [vmem:[#allocation4 + $0x100] sm:$0xff]
        %v483 = vld [vmem:[#allocation4 + $0x108] sm:$0xff]
        %v484 = vld [vmem:[#allocation4 + $0x110] sm:$0xff]
        %v485 = vld [vmem:[#allocation4 + $0x118] sm:$0xff]
        %v486 = vld [vmem:[#allocation4 + $0x120] sm:$0xff]
        %v487 = vld [vmem:[#allocation4 + $0x128] sm:$0xff]
        %v488 = vld [vmem:[#allocation4 + $0x130] sm:$0xff]
        %v489 = vld [vmem:[#allocation4 + $0x138] sm:$0xff]
        %v490 = vld [vmem:[#allocation4 + $0x140] sm:$0xff]
        %v491 = vld [vmem:[#allocation4 + $0x148] sm:$0xff]
        %v492 = vld [vmem:[#allocation4 + $0x150] sm:$0xff]
        %v493 = vld [vmem:[#allocation4 + $0x158] sm:$0xff]
        %v494 = vld [vmem:[#allocation4 + $0x160] sm:$0xff]
        %v495 = vld [vmem:[#allocation4 + $0x168] sm:$0xff]
        %v496 = vld [vmem:[#allocation4 + $0x170] sm:$0xff]
        %v497 = vld [vmem:[#allocation4 + $0x178] sm:$0xff]
        %v498 = vld [vmem:[#allocation4 + $0x180] sm:$0xff]
        %v499 = vld [vmem:[#allocation4 + $0x188] sm:$0xff]
        %v500 = vld [vmem:[#allocation4 + $0x190] sm:$0xff]
        %v501 = vld [vmem:[#allocation4 + $0x198] sm:$0xff]
        %v502 = vld [vmem:[#allocation4 + $0x1a0] sm:$0xff]
        %v503 = vld [vmem:[#allocation4 + $0x1a8] sm:$0xff]
        %v504 = vld [vmem:[#allocation4 + $0x1b0] sm:$0xff]
        %v505 = vld [vmem:[#allocation4 + $0x1b8] sm:$0xff]
        %v506 = vld [vmem:[#allocation4 + $0x1c0] sm:$0xff]
        %v507 = vld [vmem:[#allocation4 + $0x1c8] sm:$0xff]
        %v508 = vld [vmem:[#allocation4 + $0x1d0] sm:$0xff]
        %v509 = vld [vmem:[#allocation4 + $0x1d8] sm:$0xff]
        %v510 = vld [vmem:[#allocation4 + $0x1e0] sm:$0xff]
        %v511 = vld [vmem:[#allocation4 + $0x1e8] sm:$0xff]
        %v512 = vld [vmem:[#allocation4 + $0x1f0] sm:$0xff]
        %v513 = vld [vmem:[#allocation4 + $0x1f8] sm:$0xff]
        %v514 = vld [vmem:[#allocation4 + $0x200] sm:$0xff]
        %v515 = vld [vmem:[#allocation4 + $0x208] sm:$0xff]
        %v516 = vld [vmem:[#allocation4 + $0x210] sm:$0xff]
        %v517 = vld [vmem:[#allocation4 + $0x218] sm:$0xff]
        %v518 = vld [vmem:[#allocation4 + $0x220] sm:$0xff]
        %v519 = vld [vmem:[#allocation4 + $0x228] sm:$0xff]
        %v520 = vld [vmem:[#allocation4 + $0x230] sm:$0xff]
        %v521 = vld [vmem:[#allocation4 + $0x238] sm:$0xff]
        %v522 = vld [vmem:[#allocation4 + $0x240] sm:$0xff]
        %v523 = vld [vmem:[#allocation4 + $0x248] sm:$0xff]
        %v524 = vld [vmem:[#allocation4 + $0x250] sm:$0xff]
        %v525 = vld [vmem:[#allocation4 + $0x258] sm:$0xff]
        %v526 = vld [vmem:[#allocation4 + $0x260] sm:$0xff]
        %v527 = vld [vmem:[#allocation4 + $0x268] sm:$0xff]
        %v528 = vld [vmem:[#allocation4 + $0x270] sm:$0xff]
        %v529 = vld [vmem:[#allocation4 + $0x278] sm:$0xff]
        %v530 = vld [vmem:[#allocation4 + $0x280] sm:$0xff]
        %v531 = vld [vmem:[#allocation4 + $0x288] sm:$0xff]
        %v532 = vld [vmem:[#allocation4 + $0x290] sm:$0xff]
        %v533 = vld [vmem:[#allocation4 + $0x298] sm:$0xff]
        %v534 = vld [vmem:[#allocation4 + $0x2a0] sm:$0xff]
        %v535 = vld [vmem:[#allocation4 + $0x2a8] sm:$0xff]
        %v536 = vld [vmem:[#allocation4 + $0x2b0] sm:$0xff]
        %v537 = vld [vmem:[#allocation4 + $0x2b8] sm:$0xff]
        %v538 = vld [vmem:[#allocation4 + $0x2c0] sm:$0xff]
        %v539 = vld [vmem:[#allocation4 + $0x2c8] sm:$0xff]
        %v540 = vld [vmem:[#allocation4 + $0x2d0] sm:$0xff]
        %v541 = vld [vmem:[#allocation4 + $0x2d8] sm:$0xff]
        %v542 = vld [vmem:[#allocation4 + $0x2e0] sm:$0xff]
        %v543 = vld [vmem:[#allocation4 + $0x2e8] sm:$0xff]
        %v544 = vld [vmem:[#allocation4 + $0x2f0] sm:$0xff]
        %v545 = vld [vmem:[#allocation4 + $0x2f8] sm:$0xff]
        %v546 = vld [vmem:[#allocation4 + $0x300] sm:$0xff]
        %v547 = vld [vmem:[#allocation4 + $0x308] sm:$0xff]
        %v548 = vld [vmem:[#allocation4 + $0x310] sm:$0xff]
        %v549 = vld [vmem:[#allocation4 + $0x318] sm:$0xff]
        %v550 = vld [vmem:[#allocation4 + $0x320] sm:$0xff]
        %v551 = vld [vmem:[#allocation4 + $0x328] sm:$0xff]
        %v552 = vld [vmem:[#allocation4 + $0x330] sm:$0xff]
        %v553 = vld [vmem:[#allocation4 + $0x338] sm:$0xff]
        %v554 = vld [vmem:[#allocation4 + $0x340] sm:$0xff]
        %v555 = vld [vmem:[#allocation4 + $0x348] sm:$0xff]
        %v556 = vld [vmem:[#allocation4 + $0x350] sm:$0xff]
        %v557 = vld [vmem:[#allocation4 + $0x358] sm:$0xff]
        %v558 = vld [vmem:[#allocation4 + $0x360] sm:$0xff]
        %v559 = vld [vmem:[#allocation4 + $0x368] sm:$0xff]
        %v560 = vld [vmem:[#allocation4 + $0x370] sm:$0xff]
        %v561 = vld [vmem:[#allocation4 + $0x378] sm:$0xff]
        %v562 = vld [vmem:[#allocation4 + $0x380] sm:$0xff]
        %v563 = vld [vmem:[#allocation4 + $0x388] sm:$0xff]
        %v564 = vld [vmem:[#allocation4 + $0x390] sm:$0xff]
        %v565 = vld [vmem:[#allocation4 + $0x398] sm:$0xff]
        %v566 = vld [vmem:[#allocation4 + $0x3a0] sm:$0xff]
        %v567 = vld [vmem:[#allocation4 + $0x3a8] sm:$0xff]
        %v568 = vld [vmem:[#allocation4 + $0x3b0] sm:$0xff]
        %v569 = vld [vmem:[#allocation4 + $0x3b8] sm:$0xff]
        %v570 = vld [vmem:[#allocation4 + $0x3c0] sm:$0xff]
        %v571 = vld [vmem:[#allocation4 + $0x3c8] sm:$0xff]
        %v572 = vld [vmem:[#allocation4 + $0x3d0] sm:$0xff]
        %v573 = vld [vmem:[#allocation4 + $0x3d8] sm:$0xff]
        %v574 = vld [vmem:[#allocation4 + $0x3e0] sm:$0xff]
        %v575 = vld [vmem:[#allocation4 + $0x3e8] sm:$0xff]
        %v576 = vld [vmem:[#allocation4 + $0x3f0] sm:$0xff]
        %v577 = vld [vmem:[#allocation4 + $0x3f8] sm:$0xff]
        %v578 = vld [vmem:[#allocation4 + $0x400] sm:$0xff]
        %v579 = vld [vmem:[#allocation4 + $0x408] sm:$0xff]
        %v580 = vld [vmem:[#allocation4 + $0x410] sm:$0xff]
        %v581 = vld [vmem:[#allocation4 + $0x418] sm:$0xff]
        %v582 = vld [vmem:[#allocation4 + $0x420] sm:$0xff]
        %v583 = vld [vmem:[#allocation4 + $0x428] sm:$0xff]
        %v584 = vld [vmem:[#allocation4 + $0x430] sm:$0xff]
        %v585 = vld [vmem:[#allocation4 + $0x438] sm:$0xff]
        %v586 = vld [vmem:[#allocation4 + $0x440] sm:$0xff]
        %v587 = vld [vmem:[#allocation4 + $0x448] sm:$0xff]
        %v588 = vld [vmem:[#allocation4 + $0x450] sm:$0xff]
        %v589 = vld [vmem:[#allocation4 + $0x458] sm:$0xff]
        %v590 = vld [vmem:[#allocation4 + $0x460] sm:$0xff]
        %v591 = vld [vmem:[#allocation4 + $0x468] sm:$0xff]
        %v592 = vld [vmem:[#allocation4 + $0x470] sm:$0xff]
        %v593 = vld [vmem:[#allocation4 + $0x478] sm:$0xff]
        %v594 = vld [vmem:[#allocation4 + $0x480] sm:$0xff]
        %v595 = vld [vmem:[#allocation4 + $0x488] sm:$0xff]
        %v596 = vld [vmem:[#allocation4 + $0x490] sm:$0xff]
        %v597 = vld [vmem:[#allocation4 + $0x498] sm:$0xff]
        %v598 = vld [vmem:[#allocation4 + $0x4a0] sm:$0xff]
        %v599 = vld [vmem:[#allocation4 + $0x4a8] sm:$0xff]
        %v600 = vld [vmem:[#allocation4 + $0x4b0] sm:$0xff]
        %v601 = vld [vmem:[#allocation4 + $0x4b8] sm:$0xff]
        %v602 = vld [vmem:[#allocation4 + $0x4c0] sm:$0xff]
        %v603 = vld [vmem:[#allocation4 + $0x4c8] sm:$0xff]
        %v604 = vld [vmem:[#allocation4 + $0x4d0] sm:$0xff]
        %v605 = vld [vmem:[#allocation4 + $0x4d8] sm:$0xff]
        %v606 = vld [vmem:[#allocation4 + $0x4e0] sm:$0xff]
        %v607 = vld [vmem:[#allocation4 + $0x4e8] sm:$0xff]
        %v608 = vld [vmem:[#allocation4 + $0x4f0] sm:$0xff]
        %v609 = vld [vmem:[#allocation4 + $0x4f8] sm:$0xff]
        %v610 = vld [vmem:[#allocation4 + $0x500] sm:$0xff]
        %v611 = vld [vmem:[#allocation4 + $0x508] sm:$0xff]
        %v612 = vld [vmem:[#allocation4 + $0x510] sm:$0xff]
        %v613 = vld [vmem:[#allocation4 + $0x518] sm:$0xff]
        %v614 = vld [vmem:[#allocation4 + $0x520] sm:$0xff]
        %v615 = vld [vmem:[#allocation4 + $0x528] sm:$0xff]
        %v616 = vld [vmem:[#allocation4 + $0x530] sm:$0xff]
        %v617 = vld [vmem:[#allocation4 + $0x538] sm:$0xff]
        %v618 = vld [vmem:[#allocation4 + $0x540] sm:$0xff]
        %v619 = vld [vmem:[#allocation4 + $0x548] sm:$0xff]
        %v620 = vld [vmem:[#allocation4 + $0x550] sm:$0xff]
        %v621 = vld [vmem:[#allocation4 + $0x558] sm:$0xff]
        %v622 = vld [vmem:[#allocation4 + $0x560] sm:$0xff]
        %v623 = vld [vmem:[#allocation4 + $0x568] sm:$0xff]
        %v624 = vld [vmem:[#allocation4 + $0x570] sm:$0xff]
        %v625 = vld [vmem:[#allocation4 + $0x578] sm:$0xff]
        %v626 = vld [vmem:[#allocation4 + $0x580] sm:$0xff]
        %v627 = vld [vmem:[#allocation4 + $0x588] sm:$0xff]
        %v628 = vld [vmem:[#allocation4 + $0x590] sm:$0xff]
        %v629 = vld [vmem:[#allocation4 + $0x598] sm:$0xff]
        %v630 = vld [vmem:[#allocation4 + $0x5a0] sm:$0xff]
        %v631 = vld [vmem:[#allocation4 + $0x5a8] sm:$0xff]
        %v632 = vld [vmem:[#allocation4 + $0x5b0] sm:$0xff]
        %v633 = vld [vmem:[#allocation4 + $0x5b8] sm:$0xff]
        %v634 = vld [vmem:[#allocation4 + $0x5c0] sm:$0xff]
        %v635 = vld [vmem:[#allocation4 + $0x5c8] sm:$0xff]
        %v636 = vld [vmem:[#allocation4 + $0x5d0] sm:$0xff]
        %v637 = vld [vmem:[#allocation4 + $0x5d8] sm:$0xff]
        %v638 = vld [vmem:[#allocation4 + $0x5e0] sm:$0xff]
        %v639 = vld [vmem:[#allocation4 + $0x5e8] sm:$0xff]
        %v640 = vld [vmem:[#allocation4 + $0x5f0] sm:$0xff]
        %v641 = vld [vmem:[#allocation4 + $0x5f8] sm:$0xff]
        %v642 = vld [vmem:[#allocation4 + $0x600] sm:$0xff]
        %v643 = vld [vmem:[#allocation4 + $0x608] sm:$0xff]
        %v644 = vld [vmem:[#allocation4 + $0x610] sm:$0xff]
        %v645 = vld [vmem:[#allocation4 + $0x618] sm:$0xff]
        %v646 = vld [vmem:[#allocation4 + $0x620] sm:$0xff]
        %v647 = vld [vmem:[#allocation4 + $0x628] sm:$0xff]
        %v648 = vld [vmem:[#allocation4 + $0x630] sm:$0xff]
        %v649 = vld [vmem:[#allocation4 + $0x638] sm:$0xff]
        %v650 = vld [vmem:[#allocation4 + $0x640] sm:$0xff]
        %v651 = vld [vmem:[#allocation4 + $0x648] sm:$0xff]
        %v652 = vld [vmem:[#allocation4 + $0x650] sm:$0xff]
        %v653 = vld [vmem:[#allocation4 + $0x658] sm:$0xff]
        %v654 = vld [vmem:[#allocation4 + $0x660] sm:$0xff]
        %v655 = vld [vmem:[#allocation4 + $0x668] sm:$0xff]
        %v656 = vld [vmem:[#allocation4 + $0x670] sm:$0xff]
        %v657 = vld [vmem:[#allocation4 + $0x678] sm:$0xff]
        %v658 = vld [vmem:[#allocation4 + $0x680] sm:$0xff]
        %v659 = vld [vmem:[#allocation4 + $0x688] sm:$0xff]
        %v660 = vld [vmem:[#allocation4 + $0x690] sm:$0xff]
        %v661 = vld [vmem:[#allocation4 + $0x698] sm:$0xff]
        %v662 = vld [vmem:[#allocation4 + $0x6a0] sm:$0xff]
        %v663 = vld [vmem:[#allocation4 + $0x6a8] sm:$0xff]
        %v664 = vld [vmem:[#allocation4 + $0x6b0] sm:$0xff]
        %v665 = vld [vmem:[#allocation4 + $0x6b8] sm:$0xff]
        %v666 = vld [vmem:[#allocation4 + $0x6c0] sm:$0xff]
        %v667 = vld [vmem:[#allocation4 + $0x6c8] sm:$0xff]
        %v668 = vld [vmem:[#allocation4 + $0x6d0] sm:$0xff]
        %v669 = vld [vmem:[#allocation4 + $0x6d8] sm:$0xff]
        %v670 = vld [vmem:[#allocation4 + $0x6e0] sm:$0xff]
        %v671 = vld [vmem:[#allocation4 + $0x6e8] sm:$0xff]
        %v672 = vld [vmem:[#allocation4 + $0x6f0] sm:$0xff]
        %v673 = vld [vmem:[#allocation4 + $0x6f8] sm:$0xff]
        %v674 = vld [vmem:[#allocation4 + $0x700] sm:$0xff]
        %v675 = vld [vmem:[#allocation4 + $0x708] sm:$0xff]
        %v676 = vld [vmem:[#allocation4 + $0x710] sm:$0xff]
        %v677 = vld [vmem:[#allocation4 + $0x718] sm:$0xff]
        %v678 = vld [vmem:[#allocation4 + $0x720] sm:$0xff]
        %v679 = vld [vmem:[#allocation4 + $0x728] sm:$0xff]
        %v680 = vld [vmem:[#allocation4 + $0x730] sm:$0xff]
        %v681 = vld [vmem:[#allocation4 + $0x738] sm:$0xff]
        %v682 = vld [vmem:[#allocation4 + $0x740] sm:$0xff]
        %v683 = vld [vmem:[#allocation4 + $0x748] sm:$0xff]
        %v684 = vld [vmem:[#allocation4 + $0x750] sm:$0xff]
        %v685 = vld [vmem:[#allocation4 + $0x758] sm:$0xff]
        %v686 = vld [vmem:[#allocation4 + $0x760] sm:$0xff]
        %v687 = vld [vmem:[#allocation4 + $0x768] sm:$0xff]
        %v688 = vld [vmem:[#allocation4 + $0x770] sm:$0xff]
        %v689 = vld [vmem:[#allocation4 + $0x778] sm:$0xff]
        %v690 = vld [vmem:[#allocation4 + $0x780] sm:$0xff]
        %v691 = vld [vmem:[#allocation4 + $0x788] sm:$0xff]
        %v692 = vld [vmem:[#allocation4 + $0x790] sm:$0xff]
        %v693 = vld [vmem:[#allocation4 + $0x798] sm:$0xff]
        %v694 = vld [vmem:[#allocation4 + $0x7a0] sm:$0xff]
        %v695 = vld [vmem:[#allocation4 + $0x7a8] sm:$0xff]
        %v696 = vld [vmem:[#allocation4 + $0x7b0] sm:$0xff]
        %v697 = vld [vmem:[#allocation4 + $0x7b8] sm:$0xff]
        %v698 = vld [vmem:[#allocation4 + $0x7c0] sm:$0xff]
        %v699 = vld [vmem:[#allocation4 + $0x7c8] sm:$0xff]
        %v700 = vld [vmem:[#allocation4 + $0x7d0] sm:$0xff]
        %v701 = vld [vmem:[#allocation4 + $0x7d8] sm:$0xff]
        %v702 = vld [vmem:[#allocation4 + $0x7e0] sm:$0xff]
        %v703 = vld [vmem:[#allocation4 + $0x7e8] sm:$0xff]
        %v704 = vld [vmem:[#allocation4 + $0x7f0] sm:$0xff]
        %v705 = vld [vmem:[#allocation4 + $0x7f8] sm:$0xff]
        %v706 = vld [vmem:[#allocation4 + $0x800] sm:$0xff]
        %v707 = vld [vmem:[#allocation4 + $0x808] sm:$0xff]
        %v708 = vld [vmem:[#allocation4 + $0x810] sm:$0xff]
        %v709 = vld [vmem:[#allocation4 + $0x818] sm:$0xff]
        %v710 = vld [vmem:[#allocation4 + $0x820] sm:$0xff]
        %v711 = vld [vmem:[#allocation4 + $0x828] sm:$0xff]
        %v712 = vld [vmem:[#allocation4 + $0x830] sm:$0xff]
        %v713 = vld [vmem:[#allocation4 + $0x838] sm:$0xff]
        %v714 = vld [vmem:[#allocation4 + $0x840] sm:$0xff]
        %v715 = vld [vmem:[#allocation4 + $0x848] sm:$0xff]
        %v716 = vld [vmem:[#allocation4 + $0x850] sm:$0xff]
        %v717 = vld [vmem:[#allocation4 + $0x858] sm:$0xff]
        %v718 = vld [vmem:[#allocation4 + $0x860] sm:$0xff]
        %v719 = vld [vmem:[#allocation4 + $0x868] sm:$0xff]
        %v720 = vld [vmem:[#allocation4 + $0x870] sm:$0xff]
        %v721 = vld [vmem:[#allocation4 + $0x878] sm:$0xff]
        %v722 = vld [vmem:[#allocation4 + $0x880] sm:$0xff]
        %v723 = vld [vmem:[#allocation4 + $0x888] sm:$0xff]
        %v724 = vld [vmem:[#allocation4 + $0x890] sm:$0xff]
        %v725 = vld [vmem:[#allocation4 + $0x898] sm:$0xff]
        %v726 = vld [vmem:[#allocation4 + $0x8a0] sm:$0xff]
        %v727 = vld [vmem:[#allocation4 + $0x8a8] sm:$0xff]
        %v728 = vld [vmem:[#allocation4 + $0x8b0] sm:$0xff]
        %v729 = vld [vmem:[#allocation4 + $0x8b8] sm:$0xff]
        %v730 = vld [vmem:[#allocation4 + $0x8c0] sm:$0xff]
        %v731 = vld [vmem:[#allocation4 + $0x8c8] sm:$0xff]
        %v732 = vld [vmem:[#allocation4 + $0x8d0] sm:$0xff]
        %v733 = vld [vmem:[#allocation4 + $0x8d8] sm:$0xff]
        %v734 = vld [vmem:[#allocation4 + $0x8e0] sm:$0xff]
        %v735 = vld [vmem:[#allocation4 + $0x8e8] sm:$0xff]
        %v736 = vld [vmem:[#allocation4 + $0x8f0] sm:$0xff]
        %v737 = vld [vmem:[#allocation4 + $0x8f8] sm:$0xff]
        %v738 = vld [vmem:[#allocation4 + $0x900] sm:$0xff]
        %v739 = vld [vmem:[#allocation4 + $0x908] sm:$0xff]
        %v740 = vld [vmem:[#allocation4 + $0x910] sm:$0xff]
        %v741 = vld [vmem:[#allocation4 + $0x918] sm:$0xff]
        %v742 = vld [vmem:[#allocation4 + $0x920] sm:$0xff]
        %v743 = vld [vmem:[#allocation4 + $0x928] sm:$0xff]
        %v744 = vld [vmem:[#allocation4 + $0x930] sm:$0xff]
        %v745 = vld [vmem:[#allocation4 + $0x938] sm:$0xff]
        %v746 = vld [vmem:[#allocation4 + $0x940] sm:$0xff]
        %v747 = vld [vmem:[#allocation4 + $0x948] sm:$0xff]
        %v748 = vld [vmem:[#allocation4 + $0x950] sm:$0xff]
        %v749 = vld [vmem:[#allocation4 + $0x958] sm:$0xff]
        %v750 = vld [vmem:[#allocation4 + $0x960] sm:$0xff]
        %v751 = vld [vmem:[#allocation4 + $0x968] sm:$0xff]
        %v752 = vld [vmem:[#allocation4 + $0x970] sm:$0xff]
        %v753 = vld [vmem:[#allocation4 + $0x978] sm:$0xff]
        %v754 = vld [vmem:[#allocation4 + $0x980] sm:$0xff]
        %v755 = vld [vmem:[#allocation4 + $0x988] sm:$0xff]
        %v756 = vld [vmem:[#allocation4 + $0x990] sm:$0xff]
        %v757 = vld [vmem:[#allocation4 + $0x998] sm:$0xff]
        %v758 = vld [vmem:[#allocation4 + $0x9a0] sm:$0xff]
        %v759 = vld [vmem:[#allocation4 + $0x9a8] sm:$0xff]
        %v760 = vld [vmem:[#allocation4 + $0x9b0] sm:$0xff]
        %v761 = vld [vmem:[#allocation4 + $0x9b8] sm:$0xff]
        %v762 = vld [vmem:[#allocation4 + $0x9c0] sm:$0xff]
        %v763 = vld [vmem:[#allocation4 + $0x9c8] sm:$0xff]
        %v764 = vld [vmem:[#allocation4 + $0x9d0] sm:$0xff]
        %v765 = vld [vmem:[#allocation4 + $0x9d8] sm:$0xff]
        %v766 = vld [vmem:[#allocation4 + $0x9e0] sm:$0xff]
        %v767 = vld [vmem:[#allocation4 + $0x9e8] sm:$0xff]
        %v768 = vld [vmem:[#allocation4 + $0x9f0] sm:$0xff]
        %v769 = vld [vmem:[#allocation4 + $0x9f8] sm:$0xff]
        %v770 = vld [vmem:[#allocation4 + $0xa00] sm:$0xff]
        %v771 = vld [vmem:[#allocation4 + $0xa08] sm:$0xff]
        %v772 = vld [vmem:[#allocation4 + $0xa10] sm:$0xff]
        %v773 = vld [vmem:[#allocation4 + $0xa18] sm:$0xff]
        %v774 = vld [vmem:[#allocation4 + $0xa20] sm:$0xff]
        %v775 = vld [vmem:[#allocation4 + $0xa28] sm:$0xff]
        %v776 = vld [vmem:[#allocation4 + $0xa30] sm:$0xff]
        %v777 = vld [vmem:[#allocation4 + $0xa38] sm:$0xff]
        %v778 = vld [vmem:[#allocation4 + $0xa40] sm:$0xff]
        %v779 = vld [vmem:[#allocation4 + $0xa48] sm:$0xff]
        %v780 = vld [vmem:[#allocation4 + $0xa50] sm:$0xff]
        %v781 = vld [vmem:[#allocation4 + $0xa58] sm:$0xff]
        %v782 = vld [vmem:[#allocation4 + $0xa60] sm:$0xff]
        %v783 = vld [vmem:[#allocation4 + $0xa68] sm:$0xff]
        %v784 = vld [vmem:[#allocation4 + $0xa70] sm:$0xff]
        %v785 = vld [vmem:[#allocation4 + $0xa78] sm:$0xff]
        %v786 = vld [vmem:[#allocation4 + $0xa80] sm:$0xff]
        %v787 = vld [vmem:[#allocation4 + $0xa88] sm:$0xff]
        %v788 = vld [vmem:[#allocation4 + $0xa90] sm:$0xff]
        %v789 = vld [vmem:[#allocation4 + $0xa98] sm:$0xff]
        %v790 = vld [vmem:[#allocation4 + $0xaa0] sm:$0xff]
        %v791 = vld [vmem:[#allocation4 + $0xaa8] sm:$0xff]
        %v792 = vld [vmem:[#allocation4 + $0xab0] sm:$0xff]
        %v793 = vld [vmem:[#allocation4 + $0xab8] sm:$0xff]
        %v794 = vld [vmem:[#allocation4 + $0xac0] sm:$0xff]
        %v795 = vld [vmem:[#allocation4 + $0xac8] sm:$0xff]
        %v796 = vld [vmem:[#allocation4 + $0xad0] sm:$0xff]
        %v797 = vld [vmem:[#allocation4 + $0xad8] sm:$0xff]
        %v798 = vld [vmem:[#allocation4 + $0xae0] sm:$0xff]
        %v799 = vld [vmem:[#allocation4 + $0xae8] sm:$0xff]
        %v800 = vld [vmem:[#allocation4 + $0xaf0] sm:$0xff]
        %v801 = vld [vmem:[#allocation4 + $0xaf8] sm:$0xff]
        %v802 = vld [vmem:[#allocation4 + $0xb00] sm:$0xff]
        %v803 = vld [vmem:[#allocation4 + $0xb08] sm:$0xff]
        %v804 = vld [vmem:[#allocation4 + $0xb10] sm:$0xff]
        %v805 = vld [vmem:[#allocation4 + $0xb18] sm:$0xff]
        %v806 = vld [vmem:[#allocation4 + $0xb20] sm:$0xff]
        %v807 = vld [vmem:[#allocation4 + $0xb28] sm:$0xff]
        %v808 = vld [vmem:[#allocation4 + $0xb30] sm:$0xff]
        %v809 = vld [vmem:[#allocation4 + $0xb38] sm:$0xff]
        %v810 = vld [vmem:[#allocation4 + $0xb40] sm:$0xff]
        %v811 = vld [vmem:[#allocation4 + $0xb48] sm:$0xff]
        %v812 = vld [vmem:[#allocation4 + $0xb50] sm:$0xff]
        %v813 = vld [vmem:[#allocation4 + $0xb58] sm:$0xff]
        %v814 = vld [vmem:[#allocation4 + $0xb60] sm:$0xff]
        %v815 = vld [vmem:[#allocation4 + $0xb68] sm:$0xff]
        %v816 = vld [vmem:[#allocation4 + $0xb70] sm:$0xff]
        %v817 = vld [vmem:[#allocation4 + $0xb78] sm:$0xff]
        %v818 = vld [vmem:[#allocation4 + $0xb80] sm:$0xff]
        %v819 = vld [vmem:[#allocation4 + $0xb88] sm:$0xff]
        %v820 = vld [vmem:[#allocation4 + $0xb90] sm:$0xff]
        %v821 = vld [vmem:[#allocation4 + $0xb98] sm:$0xff]
        %v822 = vld [vmem:[#allocation4 + $0xba0] sm:$0xff]
        %v823 = vld [vmem:[#allocation4 + $0xba8] sm:$0xff]
        %v824 = vld [vmem:[#allocation4 + $0xbb0] sm:$0xff]
        %v825 = vld [vmem:[#allocation4 + $0xbb8] sm:$0xff]
        %v826 = vld [vmem:[#allocation4 + $0xbc0] sm:$0xff]
        %v827 = vld [vmem:[#allocation4 + $0xbc8] sm:$0xff]
        %v828 = vld [vmem:[#allocation4 + $0xbd0] sm:$0xff]
        %v829 = vld [vmem:[#allocation4 + $0xbd8] sm:$0xff]
        %v830 = vld [vmem:[#allocation4 + $0xbe0] sm:$0xff]
        %v831 = vld [vmem:[#allocation4 + $0xbe8] sm:$0xff]
        %v832 = vld [vmem:[#allocation4 + $0xbf0] sm:$0xff]
        %v833 = vld [vmem:[#allocation4 + $0xbf8] sm:$0xff]
        %v834 = vld [vmem:[#allocation4 + $0xc00] sm:$0xff]
        %v835 = vld [vmem:[#allocation4 + $0xc08] sm:$0xff]
        %v836 = vld [vmem:[#allocation4 + $0xc10] sm:$0xff]
        %v837 = vld [vmem:[#allocation4 + $0xc18] sm:$0xff]
        %v838 = vld [vmem:[#allocation4 + $0xc20] sm:$0xff]
        %v839 = vld [vmem:[#allocation4 + $0xc28] sm:$0xff]
        %v840 = vld [vmem:[#allocation4 + $0xc30] sm:$0xff]
        %v841 = vld [vmem:[#allocation4 + $0xc38] sm:$0xff]
        %v842 = vld [vmem:[#allocation4 + $0xc40] sm:$0xff]
        %v843 = vld [vmem:[#allocation4 + $0xc48] sm:$0xff]
        %v844 = vld [vmem:[#allocation4 + $0xc50] sm:$0xff]
        %v845 = vld [vmem:[#allocation4 + $0xc58] sm:$0xff]
        %v846 = vld [vmem:[#allocation4 + $0xc60] sm:$0xff]
        %v847 = vld [vmem:[#allocation4 + $0xc68] sm:$0xff]
        %v848 = vld [vmem:[#allocation4 + $0xc70] sm:$0xff]
        %v849 = vld [vmem:[#allocation4 + $0xc78] sm:$0xff]
        %v850 = vld [vmem:[#allocation4 + $0xc80] sm:$0xff]
        %v851 = vld [vmem:[#allocation4 + $0xc88] sm:$0xff]
        %v852 = vld [vmem:[#allocation4 + $0xc90] sm:$0xff]
        %v853 = vld [vmem:[#allocation4 + $0xc98] sm:$0xff]
        %v854 = vld [vmem:[#allocation4 + $0xca0] sm:$0xff]
        %v855 = vld [vmem:[#allocation4 + $0xca8] sm:$0xff]
        %v856 = vld [vmem:[#allocation4 + $0xcb0] sm:$0xff]
        %v857 = vld [vmem:[#allocation4 + $0xcb8] sm:$0xff]
        %v858 = vld [vmem:[#allocation4 + $0xcc0] sm:$0xff]
        %v859 = vld [vmem:[#allocation4 + $0xcc8] sm:$0xff]
        %v860 = vld [vmem:[#allocation4 + $0xcd0] sm:$0xff]
        %v861 = vld [vmem:[#allocation4 + $0xcd8] sm:$0xff]
        %v862 = vld [vmem:[#allocation4 + $0xce0] sm:$0xff]
        %v863 = vld [vmem:[#allocation4 + $0xce8] sm:$0xff]
        %v864 = vld [vmem:[#allocation4 + $0xcf0] sm:$0xff]
        %v865 = vld [vmem:[#allocation4 + $0xcf8] sm:$0xff]
        %v866 = vld [vmem:[#allocation4 + $0xd00] sm:$0xff]
        %v867 = vld [vmem:[#allocation4 + $0xd08] sm:$0xff]
        %v868 = vld [vmem:[#allocation4 + $0xd10] sm:$0xff]
        %v869 = vld [vmem:[#allocation4 + $0xd18] sm:$0xff]
        %v870 = vld [vmem:[#allocation4 + $0xd20] sm:$0xff]
        %v871 = vld [vmem:[#allocation4 + $0xd28] sm:$0xff]
        %v872 = vld [vmem:[#allocation4 + $0xd30] sm:$0xff]
        %v873 = vld [vmem:[#allocation4 + $0xd38] sm:$0xff]
        %v874 = vld [vmem:[#allocation4 + $0xd40] sm:$0xff]
        %v875 = vld [vmem:[#allocation4 + $0xd48] sm:$0xff]
        %v876 = vld [vmem:[#allocation4 + $0xd50] sm:$0xff]
        %v877 = vld [vmem:[#allocation4 + $0xd58] sm:$0xff]
        %v878 = vld [vmem:[#allocation4 + $0xd60] sm:$0xff]
        %v879 = vld [vmem:[#allocation4 + $0xd68] sm:$0xff]
        %v880 = vld [vmem:[#allocation4 + $0xd70] sm:$0xff]
        %v881 = vld [vmem:[#allocation4 + $0xd78] sm:$0xff]
        %v882 = vld [vmem:[#allocation6] sm:$0x7]
        %v884 = vlaneseq
        %v885 = vshrl.u32 %v884, 7
        %v886 = vsub.s32 0, %v885
        %v887 = vrot.slane %v882, %v886
        %v888 = vlaneseq
        %v889 = vshrl.u32 %v888, 7
        %v890 = vsub.s32 1, %v889
        %v891 = vrot.slane %v882, %v890
        %v892 = vlaneseq
        %v893 = vshrl.u32 %v892, 7
        %v894 = vsub.s32 2, %v893
        %v895 = vrot.slane %v882, %v894
        %899 = vmatprep.subr.mxu0 %v451
        %900 = vmatpush1.msra.mxu0 %v450
        %901 = vmatprep.subr.mxu0 %v454
        %902 = vmatpush1.msra.mxu0 %v453
        %903 = vmatprep.subr.mxu0 %v457
        %904 = vmatpush1.msra.mxu0 %v456
        %905 = vmatprep.subr.mxu0 %v460
        %906 = vmatpush1.msra.mxu0 %v459
        %907 = vmatprep.subr.mxu0 %v463
        %908 = vmatpush1.msra.mxu0 %v462
        %909 = vmatprep.subr.mxu0 %v466
        %910 = vmatpush1.msra.mxu0 %v465
        %911 = vmatprep.subr.mxu0 %v469
        %912 = vmatpush1.msra.mxu0 %v468
        %913 = vmatprep.subr.mxu0 %v472
        %914 = vmatpush1.msra.mxu0 %v471
        %915 = vmatprep.subr.mxu0 %v475
        %916 = vmatpush1.msra.mxu0 %v474
        %917 = vmatprep.subr.mxu0 %v478
        %918 = vmatpush1.msra.mxu0 %v477
        %919 = vmatprep.subr.mxu0 %v481
        %920 = vmatpush1.msra.mxu0 %v480
        %921 = vmatprep.subr.mxu0 %v484
        %922 = vmatpush1.msra.mxu0 %v483
        %923 = vmatprep.subr.mxu0 %v487
        %924 = vmatpush1.msra.mxu0 %v486
        %925 = vmatprep.subr.mxu0 %v490
        %926 = vmatpush1.msra.mxu0 %v489
        %927 = vmatprep.subr.mxu0 %v493
        %928 = vmatpush1.msra.mxu0 %v492
        %929 = vmatprep.subr.mxu0 %v496
        %930 = vmatpush1.msra.mxu0 %v495
        %931 = vmatprep.subr.mxu0 %v499
        %932 = vmatpush1.msra.mxu0 %v498
        %933 = vmatprep.subr.mxu0 %v502
        %934 = vmatpush1.msra.mxu0 %v501
        %935 = vmatprep.subr.mxu0 %v505
        %936 = vmatpush1.msra.mxu0 %v504
        %937 = vmatprep.subr.mxu0 %v508
        %938 = vmatpush1.msra.mxu0 %v507
        %939 = vmatprep.subr.mxu0 %v511
        %940 = vmatpush1.msra.mxu0 %v510
        %941 = vmatprep.subr.mxu0 %v514
        %942 = vmatpush1.msra.mxu0 %v513
        %943 = vmatprep.subr.mxu0 %v517
        %944 = vmatpush1.msra.mxu0 %v516
        %945 = vmatprep.subr.mxu0 %v520
        %946 = vmatpush1.msra.mxu0 %v519
        %947 = vmatprep.subr.mxu0 %v523
        %948 = vmatpush1.msra.mxu0 %v522
        %949 = vmatprep.subr.mxu0 %v526
        %950 = vmatpush1.msra.mxu0 %v525
        %951 = vmatprep.subr.mxu0 %v529
        %952 = vmatpush1.msra.mxu0 %v528
        %953 = vmatprep.subr.mxu0 %v532
        %954 = vmatpush1.msra.mxu0 %v531
        %955 = vmatprep.subr.mxu0 %v535
        %956 = vmatpush1.msra.mxu0 %v534
        %957 = vmatprep.subr.mxu0 %v538
        %958 = vmatpush1.msra.mxu0 %v537
        %959 = vmatprep.subr.mxu0 %v541
        %960 = vmatpush1.msra.mxu0 %v540
        %961 = vmatprep.subr.mxu0 %v544
        %962 = vmatpush1.msra.mxu0 %v543
        %963 = vmatprep.mubr.f32.mxu0 %v442
        %964 = vmatmul.mubr.f32.gmra.mrb[0].mxu0 %v441
        %v965 = vpop.f32.mrb[0].mxu0
        %v966 = vadd.f32 %v887, %v965
        %v967 = vpop.f32.mrb[0].mxu0
        %v968 = vadd.f32 %v891, %v967
        %969 = vdwg.mxu0
        %970 = vmatprep.subr.mxu0 %v547
        %971 = vmatpush1.msra.mxu0 %v546
        %972 = vmatprep.subr.mxu0 %v550
        %973 = vmatpush1.msra.mxu0 %v549
        %974 = vmatprep.subr.mxu0 %v553
        %975 = vmatpush1.msra.mxu0 %v552
        %976 = vmatprep.subr.mxu0 %v556
        %977 = vmatpush1.msra.mxu0 %v555
        %978 = vmatprep.subr.mxu0 %v559
        %979 = vmatpush1.msra.mxu0 %v558
        %980 = vmatprep.subr.mxu0 %v562
        %981 = vmatpush1.msra.mxu0 %v561
        %982 = vmatprep.subr.mxu0 %v565
        %983 = vmatpush1.msra.mxu0 %v564
        %984 = vmatprep.subr.mxu0 %v568
        %985 = vmatpush1.msra.mxu0 %v567
        %986 = vmatprep.subr.mxu0 %v571
        %987 = vmatpush1.msra.mxu0 %v570
        %988 = vmatprep.subr.mxu0 %v574
        %989 = vmatpush1.msra.mxu0 %v573
        %990 = vmatprep.subr.mxu0 %v577
        %991 = vmatpush1.msra.mxu0 %v576
        %992 = vmatprep.subr.mxu0 %v580
        %993 = vmatpush1.msra.mxu0 %v579
        %994 = vmatprep.subr.mxu0 %v583
        %995 = vmatpush1.msra.mxu0 %v582
        %996 = vmatprep.subr.mxu0 %v586
        %997 = vmatpush1.msra.mxu0 %v585
        %998 = vmatprep.subr.mxu0 %v589
        %999 = vmatpush1.msra.mxu0 %v588
        %1000 = vmatprep.subr.mxu0 %v592
        %1001 = vmatpush1.msra.mxu0 %v591
        %1002 = vmatprep.subr.mxu0 %v595
        %1003 = vmatpush1.msra.mxu0 %v594
        %1004 = vmatprep.subr.mxu0 %v598
        %1005 = vmatpush1.msra.mxu0 %v597
        %1006 = vmatprep.subr.mxu0 %v601
        %1007 = vmatpush1.msra.mxu0 %v600
        %1008 = vmatprep.subr.mxu0 %v604
        %1009 = vmatpush1.msra.mxu0 %v603
        %1010 = vmatprep.subr.mxu0 %v607
        %1011 = vmatpush1.msra.mxu0 %v606
        %1012 = vmatprep.subr.mxu0 %v610
        %1013 = vmatpush1.msra.mxu0 %v609
        %1014 = vmatprep.subr.mxu0 %v613
        %1015 = vmatpush1.msra.mxu0 %v612
        %1016 = vmatprep.subr.mxu0 %v616
        %1017 = vmatpush1.msra.mxu0 %v615
        %1018 = vmatprep.subr.mxu0 %v619
        %1019 = vmatpush1.msra.mxu0 %v618
        %1020 = vmatprep.subr.mxu0 %v622
        %1021 = vmatpush1.msra.mxu0 %v621
        %1022 = vmatprep.subr.mxu0 %v625
        %1023 = vmatpush1.msra.mxu0 %v624
        %1024 = vmatprep.subr.mxu0 %v628
        %1025 = vmatpush1.msra.mxu0 %v627
        %1026 = vmatprep.subr.mxu0 %v631
        %1027 = vmatpush1.msra.mxu0 %v630
        %1028 = vmatprep.subr.mxu0 %v634
        %1029 = vmatpush1.msra.mxu0 %v633
        %1030 = vmatprep.subr.mxu0 %v637
        %1031 = vmatpush1.msra.mxu0 %v636
        %1032 = vmatprep.subr.mxu0 %v640
        %1033 = vmatpush1.msra.mxu0 %v639
        %1034 = vmatprep.mubr.f32.mxu0 %v444
        %1035 = vmatmul.mubr.f32.gmra.mrb[0].mxu0 %v443
        %v1036 = vpop.f32.mrb[0].mxu0
        %v1037 = vadd.f32 %v966, %v1036
        %v1038 = vpop.f32.mrb[0].mxu0
        %v1039 = vadd.f32 %v968, %v1038
        %1040 = vdwg.mxu0
        %1041 = vmatprep.subr.mxu0 %v643
        %1042 = vmatpush1.msra.mxu0 %v642
        %1043 = vmatprep.subr.mxu0 %v646
        %1044 = vmatpush1.msra.mxu0 %v645
        %1045 = vmatprep.subr.mxu0 %v649
        %1046 = vmatpush1.msra.mxu0 %v648
        %1047 = vmatprep.subr.mxu0 %v652
        %1048 = vmatpush1.msra.mxu0 %v651
        %1049 = vmatprep.subr.mxu0 %v655
        %1050 = vmatpush1.msra.mxu0 %v654
        %1051 = vmatprep.subr.mxu0 %v658
        %1052 = vmatpush1.msra.mxu0 %v657
        %1053 = vmatprep.subr.mxu0 %v661
        %1054 = vmatpush1.msra.mxu0 %v660
        %1055 = vmatprep.subr.mxu0 %v664
        %1056 = vmatpush1.msra.mxu0 %v663
        %1057 = vmatprep.subr.mxu0 %v667
        %1058 = vmatpush1.msra.mxu0 %v666
        %1059 = vmatprep.subr.mxu0 %v670
        %1060 = vmatpush1.msra.mxu0 %v669
        %1061 = vmatprep.subr.mxu0 %v673
        %1062 = vmatpush1.msra.mxu0 %v672
        %1063 = vmatprep.subr.mxu0 %v676
        %1064 = vmatpush1.msra.mxu0 %v675
        %1065 = vmatprep.subr.mxu0 %v679
        %1066 = vmatpush1.msra.mxu0 %v678
        %1067 = vmatprep.subr.mxu0 %v682
        %1068 = vmatpush1.msra.mxu0 %v681
        %1069 = vmatprep.subr.mxu0 %v685
        %1070 = vmatpush1.msra.mxu0 %v684
        %1071 = vmatprep.subr.mxu0 %v688
        %1072 = vmatpush1.msra.mxu0 %v687
        %1073 = vmatprep.subr.mxu0 %v691
        %1074 = vmatpush1.msra.mxu0 %v690
        %1075 = vmatprep.subr.mxu0 %v694
        %1076 = vmatpush1.msra.mxu0 %v693
        %1077 = vmatprep.subr.mxu0 %v697
        %1078 = vmatpush1.msra.mxu0 %v696
        %1079 = vmatprep.subr.mxu0 %v700
        %1080 = vmatpush1.msra.mxu0 %v699
        %1081 = vmatprep.subr.mxu0 %v703
        %1082 = vmatpush1.msra.mxu0 %v702
        %1083 = vmatprep.subr.mxu0 %v706
        %1084 = vmatpush1.msra.mxu0 %v705
        %1085 = vmatprep.subr.mxu0 %v709
        %1086 = vmatpush1.msra.mxu0 %v708
        %1087 = vmatprep.subr.mxu0 %v712
        %1088 = vmatpush1.msra.mxu0 %v711
        %1089 = vmatprep.subr.mxu0 %v715
        %1090 = vmatpush1.msra.mxu0 %v714
        %1091 = vmatprep.subr.mxu0 %v718
        %1092 = vmatpush1.msra.mxu0 %v717
        %1093 = vmatprep.subr.mxu0 %v721
        %1094 = vmatpush1.msra.mxu0 %v720
        %1095 = vmatprep.subr.mxu0 %v724
        %1096 = vmatpush1.msra.mxu0 %v723
        %1097 = vmatprep.subr.mxu0 %v727
        %1098 = vmatpush1.msra.mxu0 %v726
        %1099 = vmatprep.subr.mxu0 %v730
        %1100 = vmatpush1.msra.mxu0 %v729
        %1101 = vmatprep.subr.mxu0 %v733
        %1102 = vmatpush1.msra.mxu0 %v732
        %1103 = vmatprep.subr.mxu0 %v736
        %1104 = vmatpush1.msra.mxu0 %v735
        %1105 = vmatprep.mubr.f32.mxu0 %v446
        %1106 = vmatmul.mubr.f32.gmra.mrb[0].mxu0 %v445
        %v1107 = vpop.f32.mrb[0].mxu0
        %v1108 = vadd.f32 %v1037, %v1107
        %v1109 = vpop.f32.mrb[0].mxu0
        %v1110 = vadd.f32 %v1039, %v1109
        %1111 = vdwg.mxu0
        %1112 = vmatprep.subr.mxu0 %v739
        %1113 = vmatpush1.msra.mxu0 %v738
        %1114 = vmatprep.subr.mxu0 %v742
        %1115 = vmatpush1.msra.mxu0 %v741
        %1116 = vmatprep.subr.mxu0 %v745
        %1117 = vmatpush1.msra.mxu0 %v744
        %1118 = vmatprep.subr.mxu0 %v748
        %1119 = vmatpush1.msra.mxu0 %v747
        %1120 = vmatprep.subr.mxu0 %v751
        %1121 = vmatpush1.msra.mxu0 %v750
        %1122 = vmatprep.subr.mxu0 %v754
        %1123 = vmatpush1.msra.mxu0 %v753
        %1124 = vmatprep.subr.mxu0 %v757
        %1125 = vmatpush1.msra.mxu0 %v756
        %1126 = vmatprep.subr.mxu0 %v760
        %1127 = vmatpush1.msra.mxu0 %v759
        %1128 = vmatprep.subr.mxu0 %v763
        %1129 = vmatpush1.msra.mxu0 %v762
        %1130 = vmatprep.subr.mxu0 %v766
        %1131 = vmatpush1.msra.mxu0 %v765
        %1132 = vmatprep.subr.mxu0 %v769
        %1133 = vmatpush1.msra.mxu0 %v768
        %1134 = vmatprep.subr.mxu0 %v772
        %1135 = vmatpush1.msra.mxu0 %v771
        %1136 = vmatprep.subr.mxu0 %v775
        %1137 = vmatpush1.msra.mxu0 %v774
        %1138 = vmatprep.subr.mxu0 %v778
        %1139 = vmatpush1.msra.mxu0 %v777
        %1140 = vmatprep.subr.mxu0 %v781
        %1141 = vmatpush1.msra.mxu0 %v780
        %1142 = vmatprep.subr.mxu0 %v784
        %1143 = vmatpush1.msra.mxu0 %v783
        %1144 = vmatprep.subr.mxu0 %v787
        %1145 = vmatpush1.msra.mxu0 %v786
        %1146 = vmatprep.subr.mxu0 %v790
        %1147 = vmatpush1.msra.mxu0 %v789
        %1148 = vmatprep.subr.mxu0 %v793
        %1149 = vmatpush1.msra.mxu0 %v792
        %1150 = vmatprep.subr.mxu0 %v796
        %1151 = vmatpush1.msra.mxu0 %v795
        %1152 = vmatprep.subr.mxu0 %v799
        %1153 = vmatpush1.msra.mxu0 %v798
        %1154 = vmatprep.subr.mxu0 %v802
        %1155 = vmatpush1.msra.mxu0 %v801
        %1156 = vmatprep.subr.mxu0 %v805
        %1157 = vmatpush1.msra.mxu0 %v804
        %1158 = vmatprep.subr.mxu0 %v808
        %1159 = vmatpush1.msra.mxu0 %v807
        %1160 = vmatprep.subr.mxu0 %v811
        %1161 = vmatpush1.msra.mxu0 %v810
        %1162 = vmatprep.subr.mxu0 %v814
        %1163 = vmatpush1.msra.mxu0 %v813
        %1164 = vmatprep.subr.mxu0 %v817
        %1165 = vmatpush1.msra.mxu0 %v816
        %1166 = vmatprep.subr.mxu0 %v820
        %1167 = vmatpush1.msra.mxu0 %v819
        %1168 = vmatprep.subr.mxu0 %v823
        %1169 = vmatpush1.msra.mxu0 %v822
        %1170 = vmatprep.subr.mxu0 %v826
        %1171 = vmatpush1.msra.mxu0 %v825
        %1172 = vmatprep.subr.mxu0 %v829
        %1173 = vmatpush1.msra.mxu0 %v828
        %1174 = vmatprep.subr.mxu0 %v832
        %1175 = vmatpush1.msra.mxu0 %v831
        %1176 = vmatprep.mubr.f32.mxu0 %v448
        %1177 = vmatmul.mubr.f32.gmra.mrb[0].mxu0 %v447
        %v1178 = vpop.f32.mrb[0].mxu0
        %v1179 = vadd.f32 %v1108, %v1178
        %v1180 = vpop.f32.mrb[0].mxu0
        %v1181 = vadd.f32 %v1110, %v1180
        %1182 = vdwg.mxu0
        %1183 = vmatprep.subr.mxu0 %v835
        %1184 = vmatpush1.msra.mxu0 %v834
        %1185 = vmatprep.subr.mxu0 %v838
        %1186 = vmatpush1.msra.mxu0 %v837
        %1187 = vmatprep.subr.mxu0 %v841
        %1188 = vmatpush1.msra.mxu0 %v840
        %1189 = vmatprep.subr.mxu0 %v844
        %1190 = vmatpush1.msra.mxu0 %v843
        %1191 = vmatprep.subr.mxu0 %v847
        %1192 = vmatpush1.msra.mxu0 %v846
        %1193 = vmatprep.subr.mxu0 %v850
        %1194 = vmatpush1.msra.mxu0 %v849
        %1195 = vmatprep.subr.mxu0 %v853
        %1196 = vmatpush1.msra.mxu0 %v852
        %1197 = vmatprep.subr.mxu0 %v856
        %1198 = vmatpush1.msra.mxu0 %v855
        %1199 = vmatprep.subr.mxu0 %v859
        %1200 = vmatpush1.msra.mxu0 %v858
        %1201 = vmatprep.subr.mxu0 %v862
        %1202 = vmatpush1.msra.mxu0 %v861
        %1203 = vmatprep.subr.mxu0 %v865
        %1204 = vmatpush1.msra.mxu0 %v864
        %1205 = vmatprep.subr.mxu0 %v868
        %1206 = vmatpush1.msra.mxu0 %v867
        %1207 = vmatprep.subr.mxu0 %v871
        %1208 = vmatpush1.msra.mxu0 %v870
        %1209 = vmatprep.subr.mxu0 %v874
        %1210 = vmatpush1.msra.mxu0 %v873
        %1211 = vmatprep.subr.mxu0 %v877
        %1212 = vmatpush1.msra.mxu0 %v876
        %1213 = vmatprep.subr.mxu0 %v880
        %1214 = vmatpush1.msra.mxu0 %v879
        %1215 = vmatprep.subr.mxu0 0.0
        %1216 = vmatpush1.msra.mxu0 0.0
        %1217 = vmatprep.subr.mxu0 0.0
        %1218 = vmatpush1.msra.mxu0 0.0
        %1219 = vmatprep.subr.mxu0 0.0
        %1220 = vmatpush1.msra.mxu0 0.0
        %1221 = vmatprep.subr.mxu0 0.0
        %1222 = vmatpush1.msra.mxu0 0.0
        %1223 = vmatprep.subr.mxu0 0.0
        %1224 = vmatpush1.msra.mxu0 0.0
        %1225 = vmatprep.subr.mxu0 0.0
        %1226 = vmatpush1.msra.mxu0 0.0
        %1227 = vmatprep.subr.mxu0 0.0
        %1228 = vmatpush1.msra.mxu0 0.0
        %1229 = vmatprep.subr.mxu0 0.0
        %1230 = vmatpush1.msra.mxu0 0.0
        %1231 = vmatprep.subr.mxu0 0.0
        %1232 = vmatpush1.msra.mxu0 0.0
        %1233 = vmatprep.subr.mxu0 0.0
        %1234 = vmatpush1.msra.mxu0 0.0
        %1235 = vmatprep.subr.mxu0 0.0
        %1236 = vmatpush1.msra.mxu0 0.0
        %1237 = vmatprep.subr.mxu0 0.0
        %1238 = vmatpush1.msra.mxu0 0.0
        %1239 = vmatprep.subr.mxu0 0.0
        %1240 = vmatpush1.msra.mxu0 0.0
        %1241 = vmatprep.subr.mxu0 0.0
        %1242 = vmatpush1.msra.mxu0 0.0
        %1243 = vmatprep.subr.mxu0 0.0
        %1244 = vmatpush1.msra.mxu0 0.0
        %1245 = vmatprep.subr.mxu0 0.0
        %1246 = vmatpush1.msra.mxu0 0.0
        %1247 = vmatprep.mubr.f32.mxu0 0.0
        %1248 = vmatmul.mubr.f32.gmra.mrb[0].mxu0 %v449
        %v1249 = vpop.f32.mrb[0].mxu0
        %v1250 = vadd.f32 %v1179, %v1249
        %v1251 = vpop.f32.mrb[0].mxu0
        %v1252 = vadd.f32 %v1181, %v1251
        %1253 = vdwg.mxu0
        %1254 = vmatprep.subr.mxu0 0.0
        %1255 = vmatpush1.msra.mxu0 %v452
        %1256 = vmatprep.subr.mxu0 0.0
        %1257 = vmatpush1.msra.mxu0 %v455
        %1258 = vmatprep.subr.mxu0 0.0
        %1259 = vmatpush1.msra.mxu0 %v458
        %1260 = vmatprep.subr.mxu0 0.0
        %1261 = vmatpush1.msra.mxu0 %v461
        %1262 = vmatprep.subr.mxu0 0.0
        %1263 = vmatpush1.msra.mxu0 %v464
        %1264 = vmatprep.subr.mxu0 0.0
        %1265 = vmatpush1.msra.mxu0 %v467
        %1266 = vmatprep.subr.mxu0 0.0
        %1267 = vmatpush1.msra.mxu0 %v470
        %1268 = vmatprep.subr.mxu0 0.0
        %1269 = vmatpush1.msra.mxu0 %v473
        %1270 = vmatprep.subr.mxu0 0.0
        %1271 = vmatpush1.msra.mxu0 %v476
        %1272 = vmatprep.subr.mxu0 0.0
        %1273 = vmatpush1.msra.mxu0 %v479
        %1274 = vmatprep.subr.mxu0 0.0
        %1275 = vmatpush1.msra.mxu0 %v482
        %1276 = vmatprep.subr.mxu0 0.0
        %1277 = vmatpush1.msra.mxu0 %v485
        %1278 = vmatprep.subr.mxu0 0.0
        %1279 = vmatpush1.msra.mxu0 %v488
        %1280 = vmatprep.subr.mxu0 0.0
        %1281 = vmatpush1.msra.mxu0 %v491
        %1282 = vmatprep.subr.mxu0 0.0
        %1283 = vmatpush1.msra.mxu0 %v494
        %1284 = vmatprep.subr.mxu0 0.0
        %1285 = vmatpush1.msra.mxu0 %v497
        %1286 = vmatprep.subr.mxu0 0.0
        %1287 = vmatpush1.msra.mxu0 %v500
        %1288 = vmatprep.subr.mxu0 0.0
        %1289 = vmatpush1.msra.mxu0 %v503
        %1290 = vmatprep.subr.mxu0 0.0
        %1291 = vmatpush1.msra.mxu0 %v506
        %1292 = vmatprep.subr.mxu0 0.0
        %1293 = vmatpush1.msra.mxu0 %v509
        %1294 = vmatprep.subr.mxu0 0.0
        %1295 = vmatpush1.msra.mxu0 %v512
        %1296 = vmatprep.subr.mxu0 0.0
        %1297 = vmatpush1.msra.mxu0 %v515
        %1298 = vmatprep.subr.mxu0 0.0
        %1299 = vmatpush1.msra.mxu0 %v518
        %1300 = vmatprep.subr.mxu0 0.0
        %1301 = vmatpush1.msra.mxu0 %v521
        %1302 = vmatprep.subr.mxu0 0.0
        %1303 = vmatpush1.msra.mxu0 %v524
        %1304 = vmatprep.subr.mxu0 0.0
        %1305 = vmatpush1.msra.mxu0 %v527
        %1306 = vmatprep.subr.mxu0 0.0
        %1307 = vmatpush1.msra.mxu0 %v530
        %1308 = vmatprep.subr.mxu0 0.0
        %1309 = vmatpush1.msra.mxu0 %v533
        %1310 = vmatprep.subr.mxu0 0.0
        %1311 = vmatpush1.msra.mxu0 %v536
        %1312 = vmatprep.subr.mxu0 0.0
        %1313 = vmatpush1.msra.mxu0 %v539
        %1314 = vmatprep.subr.mxu0 0.0
        %1315 = vmatpush1.msra.mxu0 %v542
        %1316 = vmatprep.subr.mxu0 0.0
        %1317 = vmatpush1.msra.mxu0 %v545
        %1318 = vmatprep.mubr.f32.mxu0 %v442
        %1319 = vmatmul.mubr.f32.gmra.mrb[0].mxu0 %v441
        %v1320 = vpop.f32.mrb[0].mxu0
        %v1321 = vadd.f32 %v895, %v1320
        %v1322 = vpop.f32.mrb[0].mxu0
        %1323 = vdwg.mxu0
        %1324 = vmatprep.subr.mxu0 0.0
        %1325 = vmatpush1.msra.mxu0 %v548
        %1326 = vmatprep.subr.mxu0 0.0
        %1327 = vmatpush1.msra.mxu0 %v551
        %1328 = vmatprep.subr.mxu0 0.0
        %1329 = vmatpush1.msra.mxu0 %v554
        %1330 = vmatprep.subr.mxu0 0.0
        %1331 = vmatpush1.msra.mxu0 %v557
        %1332 = vmatprep.subr.mxu0 0.0
        %1333 = vmatpush1.msra.mxu0 %v560
        %1334 = vmatprep.subr.mxu0 0.0
        %1335 = vmatpush1.msra.mxu0 %v563
        %1336 = vmatprep.subr.mxu0 0.0
        %1337 = vmatpush1.msra.mxu0 %v566
        %1338 = vmatprep.subr.mxu0 0.0
        %1339 = vmatpush1.msra.mxu0 %v569
        %1340 = vmatprep.subr.mxu0 0.0
        %1341 = vmatpush1.msra.mxu0 %v572
        %1342 = vmatprep.subr.mxu0 0.0
        %1343 = vmatpush1.msra.mxu0 %v575
        %1344 = vmatprep.subr.mxu0 0.0
        %1345 = vmatpush1.msra.mxu0 %v578
        %1346 = vmatprep.subr.mxu0 0.0
        %1347 = vmatpush1.msra.mxu0 %v581
        %1348 = vmatprep.subr.mxu0 0.0
        %1349 = vmatpush1.msra.mxu0 %v584
        %1350 = vmatprep.subr.mxu0 0.0
        %1351 = vmatpush1.msra.mxu0 %v587
        %1352 = vmatprep.subr.mxu0 0.0
        %1353 = vmatpush1.msra.mxu0 %v590
        %1354 = vmatprep.subr.mxu0 0.0
        %1355 = vmatpush1.msra.mxu0 %v593
        %1356 = vmatprep.subr.mxu0 0.0
        %1357 = vmatpush1.msra.mxu0 %v596
        %1358 = vmatprep.subr.mxu0 0.0
        %1359 = vmatpush1.msra.mxu0 %v599
        %1360 = vmatprep.subr.mxu0 0.0
        %1361 = vmatpush1.msra.mxu0 %v602
        %1362 = vmatprep.subr.mxu0 0.0
        %1363 = vmatpush1.msra.mxu0 %v605
        %1364 = vmatprep.subr.mxu0 0.0
        %1365 = vmatpush1.msra.mxu0 %v608
        %1366 = vmatprep.subr.mxu0 0.0
        %1367 = vmatpush1.msra.mxu0 %v611
        %1368 = vmatprep.subr.mxu0 0.0
        %1369 = vmatpush1.msra.mxu0 %v614
        %1370 = vmatprep.subr.mxu0 0.0
        %1371 = vmatpush1.msra.mxu0 %v617
        %1372 = vmatprep.subr.mxu0 0.0
        %1373 = vmatpush1.msra.mxu0 %v620
        %1374 = vmatprep.subr.mxu0 0.0
        %1375 = vmatpush1.msra.mxu0 %v623
        %1376 = vmatprep.subr.mxu0 0.0
        %1377 = vmatpush1.msra.mxu0 %v626
        %1378 = vmatprep.subr.mxu0 0.0
        %1379 = vmatpush1.msra.mxu0 %v629
        %1380 = vmatprep.subr.mxu0 0.0
        %1381 = vmatpush1.msra.mxu0 %v632
        %1382 = vmatprep.subr.mxu0 0.0
        %1383 = vmatpush1.msra.mxu0 %v635
        %1384 = vmatprep.subr.mxu0 0.0
        %1385 = vmatpush1.msra.mxu0 %v638
        %1386 = vmatprep.subr.mxu0 0.0
        %1387 = vmatpush1.msra.mxu0 %v641
        %1388 = vmatprep.mubr.f32.mxu0 %v444
        %1389 = vmatmul.mubr.f32.gmra.mrb[0].mxu0 %v443
        %v1390 = vpop.f32.mrb[0].mxu0
        %v1391 = vadd.f32 %v1321, %v1390
        %v1392 = vpop.f32.mrb[0].mxu0
        %1393 = vdwg.mxu0
        %1394 = vmatprep.subr.mxu0 0.0
        %1395 = vmatpush1.msra.mxu0 %v644
        %1396 = vmatprep.subr.mxu0 0.0
        %1397 = vmatpush1.msra.mxu0 %v647
        %1398 = vmatprep.subr.mxu0 0.0
        %1399 = vmatpush1.msra.mxu0 %v650
        %1400 = vmatprep.subr.mxu0 0.0
        %1401 = vmatpush1.msra.mxu0 %v653
        %1402 = vmatprep.subr.mxu0 0.0
        %1403 = vmatpush1.msra.mxu0 %v656
        %1404 = vmatprep.subr.mxu0 0.0
        %1405 = vmatpush1.msra.mxu0 %v659
        %1406 = vmatprep.subr.mxu0 0.0
        %1407 = vmatpush1.msra.mxu0 %v662
        %1408 = vmatprep.subr.mxu0 0.0
        %1409 = vmatpush1.msra.mxu0 %v665
        %1410 = vmatprep.subr.mxu0 0.0
        %1411 = vmatpush1.msra.mxu0 %v668
        %1412 = vmatprep.subr.mxu0 0.0
        %1413 = vmatpush1.msra.mxu0 %v671
        %1414 = vmatprep.subr.mxu0 0.0
        %1415 = vmatpush1.msra.mxu0 %v674
        %1416 = vmatprep.subr.mxu0 0.0
        %1417 = vmatpush1.msra.mxu0 %v677
        %1418 = vmatprep.subr.mxu0 0.0
        %1419 = vmatpush1.msra.mxu0 %v680
        %1420 = vmatprep.subr.mxu0 0.0
        %1421 = vmatpush1.msra.mxu0 %v683
        %1422 = vmatprep.subr.mxu0 0.0
        %1423 = vmatpush1.msra.mxu0 %v686
        %1424 = vmatprep.subr.mxu0 0.0
        %1425 = vmatpush1.msra.mxu0 %v689
        %1426 = vmatprep.subr.mxu0 0.0
        %1427 = vmatpush1.msra.mxu0 %v692
        %1428 = vmatprep.subr.mxu0 0.0
        %1429 = vmatpush1.msra.mxu0 %v695
        %1430 = vmatprep.subr.mxu0 0.0
        %1431 = vmatpush1.msra.mxu0 %v698
        %1432 = vmatprep.subr.mxu0 0.0
        %1433 = vmatpush1.msra.mxu0 %v701
        %1434 = vmatprep.subr.mxu0 0.0
        %1435 = vmatpush1.msra.mxu0 %v704
        %1436 = vmatprep.subr.mxu0 0.0
        %1437 = vmatpush1.msra.mxu0 %v707
        %1438 = vmatprep.subr.mxu0 0.0
        %1439 = vmatpush1.msra.mxu0 %v710
        %1440 = vmatprep.subr.mxu0 0.0
        %1441 = vmatpush1.msra.mxu0 %v713
        %1442 = vmatprep.subr.mxu0 0.0
        %1443 = vmatpush1.msra.mxu0 %v716
        %1444 = vmatprep.subr.mxu0 0.0
        %1445 = vmatpush1.msra.mxu0 %v719
        %1446 = vmatprep.subr.mxu0 0.0
        %1447 = vmatpush1.msra.mxu0 %v722
        %1448 = vmatprep.subr.mxu0 0.0
        %1449 = vmatpush1.msra.mxu0 %v725
        %1450 = vmatprep.subr.mxu0 0.0
        %1451 = vmatpush1.msra.mxu0 %v728
        %1452 = vmatprep.subr.mxu0 0.0
        %1453 = vmatpush1.msra.mxu0 %v731
        %1454 = vmatprep.subr.mxu0 0.0
        %1455 = vmatpush1.msra.mxu0 %v734
        %1456 = vmatprep.subr.mxu0 0.0
        %1457 = vmatpush1.msra.mxu0 %v737
        %1458 = vmatprep.mubr.f32.mxu0 %v446
        %1459 = vmatmul.mubr.f32.gmra.mrb[0].mxu0 %v445
        %v1460 = vpop.f32.mrb[0].mxu0
        %v1461 = vadd.f32 %v1391, %v1460
        %v1462 = vpop.f32.mrb[0].mxu0
        %1463 = vdwg.mxu0
        %1464 = vmatprep.subr.mxu0 0.0
        %1465 = vmatpush1.msra.mxu0 %v740
        %1466 = vmatprep.subr.mxu0 0.0
        %1467 = vmatpush1.msra.mxu0 %v743
        %1468 = vmatprep.subr.mxu0 0.0
        %1469 = vmatpush1.msra.mxu0 %v746
        %1470 = vmatprep.subr.mxu0 0.0
        %1471 = vmatpush1.msra.mxu0 %v749
        %1472 = vmatprep.subr.mxu0 0.0
        %1473 = vmatpush1.msra.mxu0 %v752
        %1474 = vmatprep.subr.mxu0 0.0
        %1475 = vmatpush1.msra.mxu0 %v755
        %1476 = vmatprep.subr.mxu0 0.0
        %1477 = vmatpush1.msra.mxu0 %v758
        %1478 = vmatprep.subr.mxu0 0.0
        %1479 = vmatpush1.msra.mxu0 %v761
        %1480 = vmatprep.subr.mxu0 0.0
        %1481 = vmatpush1.msra.mxu0 %v764
        %1482 = vmatprep.subr.mxu0 0.0
        %1483 = vmatpush1.msra.mxu0 %v767
        %1484 = vmatprep.subr.mxu0 0.0
        %1485 = vmatpush1.msra.mxu0 %v770
        %1486 = vmatprep.subr.mxu0 0.0
        %1487 = vmatpush1.msra.mxu0 %v773
        %1488 = vmatprep.subr.mxu0 0.0
        %1489 = vmatpush1.msra.mxu0 %v776
        %1490 = vmatprep.subr.mxu0 0.0
        %1491 = vmatpush1.msra.mxu0 %v779
        %1492 = vmatprep.subr.mxu0 0.0
        %1493 = vmatpush1.msra.mxu0 %v782
        %1494 = vmatprep.subr.mxu0 0.0
        %1495 = vmatpush1.msra.mxu0 %v785
        %1496 = vmatprep.subr.mxu0 0.0
        %1497 = vmatpush1.msra.mxu0 %v788
        %1498 = vmatprep.subr.mxu0 0.0
        %1499 = vmatpush1.msra.mxu0 %v791
        %1500 = vmatprep.subr.mxu0 0.0
        %1501 = vmatpush1.msra.mxu0 %v794
        %1502 = vmatprep.subr.mxu0 0.0
        %1503 = vmatpush1.msra.mxu0 %v797
        %1504 = vmatprep.subr.mxu0 0.0
        %1505 = vmatpush1.msra.mxu0 %v800
        %1506 = vmatprep.subr.mxu0 0.0
        %1507 = vmatpush1.msra.mxu0 %v803
        %1508 = vmatprep.subr.mxu0 0.0
        %1509 = vmatpush1.msra.mxu0 %v806
        %1510 = vmatprep.subr.mxu0 0.0
        %1511 = vmatpush1.msra.mxu0 %v809
        %1512 = vmatprep.subr.mxu0 0.0
        %1513 = vmatpush1.msra.mxu0 %v812
        %1514 = vmatprep.subr.mxu0 0.0
        %1515 = vmatpush1.msra.mxu0 %v815
        %1516 = vmatprep.subr.mxu0 0.0
        %1517 = vmatpush1.msra.mxu0 %v818
        %1518 = vmatprep.subr.mxu0 0.0
        %1519 = vmatpush1.msra.mxu0 %v821
        %1520 = vmatprep.subr.mxu0 0.0
        %1521 = vmatpush1.msra.mxu0 %v824
        %1522 = vmatprep.subr.mxu0 0.0
        %1523 = vmatpush1.msra.mxu0 %v827
        %1524 = vmatprep.subr.mxu0 0.0
        %1525 = vmatpush1.msra.mxu0 %v830
        %1526 = vmatprep.subr.mxu0 0.0
        %1527 = vmatpush1.msra.mxu0 %v833
        %1528 = vmatprep.mubr.f32.mxu0 %v448
        %1529 = vmatmul.mubr.f32.gmra.mrb[0].mxu0 %v447
        %v1530 = vpop.f32.mrb[0].mxu0
        %v1531 = vadd.f32 %v1461, %v1530
        %v1532 = vpop.f32.mrb[0].mxu0
        %1533 = vdwg.mxu0
        %1534 = vmatprep.subr.mxu0 0.0
        %1535 = vmatpush1.msra.mxu0 %v836
        %1536 = vmatprep.subr.mxu0 0.0
        %1537 = vmatpush1.msra.mxu0 %v839
        %1538 = vmatprep.subr.mxu0 0.0
        %1539 = vmatpush1.msra.mxu0 %v842
        %1540 = vmatprep.subr.mxu0 0.0
        %1541 = vmatpush1.msra.mxu0 %v845
        %1542 = vmatprep.subr.mxu0 0.0
        %1543 = vmatpush1.msra.mxu0 %v848
        %1544 = vmatprep.subr.mxu0 0.0
        %1545 = vmatpush1.msra.mxu0 %v851
        %1546 = vmatprep.subr.mxu0 0.0
        %1547 = vmatpush1.msra.mxu0 %v854
        %1548 = vmatprep.subr.mxu0 0.0
        %1549 = vmatpush1.msra.mxu0 %v857
        %1550 = vmatprep.subr.mxu0 0.0
        %1551 = vmatpush1.msra.mxu0 %v860
        %1552 = vmatprep.subr.mxu0 0.0
        %1553 = vmatpush1.msra.mxu0 %v863
        %1554 = vmatprep.subr.mxu0 0.0
        %1555 = vmatpush1.msra.mxu0 %v866
        %1556 = vmatprep.subr.mxu0 0.0
        %1557 = vmatpush1.msra.mxu0 %v869
        %1558 = vmatprep.subr.mxu0 0.0
        %1559 = vmatpush1.msra.mxu0 %v872
        %1560 = vmatprep.subr.mxu0 0.0
        %1561 = vmatpush1.msra.mxu0 %v875
        %1562 = vmatprep.subr.mxu0 0.0
        %1563 = vmatpush1.msra.mxu0 %v878
        %1564 = vmatprep.subr.mxu0 0.0
        %1565 = vmatpush1.msra.mxu0 %v881
        %1566 = vmatprep.subr.mxu0 0.0
        %1567 = vmatpush1.msra.mxu0 0.0
        %1568 = vmatprep.subr.mxu0 0.0
        %1569 = vmatpush1.msra.mxu0 0.0
        %1570 = vmatprep.subr.mxu0 0.0
        %1571 = vmatpush1.msra.mxu0 0.0
        %1572 = vmatprep.subr.mxu0 0.0
        %1573 = vmatpush1.msra.mxu0 0.0
        %1574 = vmatprep.subr.mxu0 0.0
        %1575 = vmatpush1.msra.mxu0 0.0
        %1576 = vmatprep.subr.mxu0 0.0
        %1577 = vmatpush1.msra.mxu0 0.0
        %1578 = vmatprep.subr.mxu0 0.0
        %1579 = vmatpush1.msra.mxu0 0.0
        %1580 = vmatprep.subr.mxu0 0.0
        %1581 = vmatpush1.msra.mxu0 0.0
        %1582 = vmatprep.subr.mxu0 0.0
        %1583 = vmatpush1.msra.mxu0 0.0
        %1584 = vmatprep.subr.mxu0 0.0
        %1585 = vmatpush1.msra.mxu0 0.0
        %1586 = vmatprep.subr.mxu0 0.0
        %1587 = vmatpush1.msra.mxu0 0.0
        %1588 = vmatprep.subr.mxu0 0.0
        %1589 = vmatpush1.msra.mxu0 0.0
        %1590 = vmatprep.subr.mxu0 0.0
        %1591 = vmatpush1.msra.mxu0 0.0
        %1592 = vmatprep.subr.mxu0 0.0
        %1593 = vmatpush1.msra.mxu0 0.0
        %1594 = vmatprep.subr.mxu0 0.0
        %1595 = vmatpush1.msra.mxu0 0.0
        %1596 = vmatprep.subr.mxu0 0.0
        %1597 = vmatpush1.msra.mxu0 0.0
        %1598 = vmatprep.mubr.f32.mxu0 0.0
        %1599 = vmatmul.mubr.f32.gmra.mrb[0].mxu0 %v449
        %v1600 = vpop.f32.mrb[0].mxu0
        %v1601 = vadd.f32 %v1531, %v1600
        %v1602 = vpop.f32.mrb[0].mxu0
        %1603 = vdwg.mxu0
        %v1604 = vadd.f32 %v1252, %v1250
        %v1605 = vxor.u32 %v1601, 2147483648
        %v1606 = vmul.f32 %v1605, 1.442695
        %v1607 = vpow.pop %v1606
        %v1608 = vadd.f32 %v1607, 1.0
        %v1609 = vrcp.pop %v1608
        %v1610 = vmul.f32 1.0, %v1609
        %v1611 = vmul.f32 %v1604, %v1610
        %1612 = vadd.xlane.f32.xlu0 %v1611
        %v1613 = vpop.xlane.xlu0 %1612
        %v1614 = vrcp.pop 128.0
        %v1615 = vmul.f32 %v1613, %v1614
        %v1616 = vsub.f32 %v1611, %v1615
        %v1617 = vmul.f32 %v1616, %v1616
        %1618 = vadd.xlane.f32.xlu0 %v1617
        %v1619 = vpop.xlane.xlu0 %1618
        %v1620 = vmul.f32 %v1619, %v1614
        %v1621 = vadd.f32 %v1620, 1e-05
        %v1622 = vrsqrt.pop %v1621
        %v1623 = vmul.f32 %v1616, %v1622
        %v1624 = vld [vmem:[#allocation7] sm:$0x1]
        %v1626 = vlaneseq
        %v1627 = vshrl.u32 %v1626, 7
        %v1628 = vsub.s32 0, %v1627
        %v1629 = vrot.slane %v1624, %v1628
        %v1631 = vmul.f32 %v1623, %v1629
        %v1632 = vld [vmem:[#allocation9] sm:$0x1]
        %v1634 = vlaneseq
        %v1635 = vshrl.u32 %v1634, 7
        %v1636 = vsub.s32 0, %v1635
        %v1637 = vrot.slane %v1632, %v1636
        %v1639 = vadd.f32 %v1631, %v1637
        %v1640 = vld [vmem:[#allocation10] sm:$0xff]
        %v1641 = vld [vmem:[#allocation10 + $0x8] sm:$0xff]
        %v1642 = vld [vmem:[#allocation10 + $0x10] sm:$0xff]
        %v1643 = vld [vmem:[#allocation10 + $0x18] sm:$0xff]
        %v1644 = vld [vmem:[#allocation10 + $0x20] sm:$0xff]
        %v1645 = vld [vmem:[#allocation10 + $0x28] sm:$0xff]
        %v1646 = vld [vmem:[#allocation10 + $0x30] sm:$0xff]
        %v1647 = vld [vmem:[#allocation10 + $0x38] sm:$0xff]
        %v1648 = vld [vmem:[#allocation10 + $0x40] sm:$0xff]
        %v1649 = vld [vmem:[#allocation10 + $0x48] sm:$0xff]
        %v1650 = vld [vmem:[#allocation10 + $0x50] sm:$0xff]
        %v1651 = vld [vmem:[#allocation10 + $0x58] sm:$0xff]
        %v1652 = vld [vmem:[#allocation10 + $0x60] sm:$0xff]
        %v1653 = vld [vmem:[#allocation10 + $0x68] sm:$0xff]
        %v1654 = vld [vmem:[#allocation10 + $0x70] sm:$0xff]
        %v1655 = vld [vmem:[#allocation10 + $0x78] sm:$0xff]
        %v1656 = vld [vmem:[#allocation12] sm:$0x1]
        %v1658 = vlaneseq
        %v1659 = vshrl.u32 %v1658, 7
        %v1660 = vsub.s32 0, %v1659
        %v1661 = vrot.slane %v1656, %v1660
        %1663 = vmatprep.subr.mxu0 0.0
        %1664 = vmatpush1.msra.mxu0 %v1640
        %1665 = vmatprep.subr.mxu0 0.0
        %1666 = vmatpush1.msra.mxu0 %v1641
        %1667 = vmatprep.subr.mxu0 0.0
        %1668 = vmatpush1.msra.mxu0 %v1642
        %1669 = vmatprep.subr.mxu0 0.0
        %1670 = vmatpush1.msra.mxu0 %v1643
        %1671 = vmatprep.subr.mxu0 0.0
        %1672 = vmatpush1.msra.mxu0 %v1644
        %1673 = vmatprep.subr.mxu0 0.0
        %1674 = vmatpush1.msra.mxu0 %v1645
        %1675 = vmatprep.subr.mxu0 0.0
        %1676 = vmatpush1.msra.mxu0 %v1646
        %1677 = vmatprep.subr.mxu0 0.0
        %1678 = vmatpush1.msra.mxu0 %v1647
        %1679 = vmatprep.subr.mxu0 0.0
        %1680 = vmatpush1.msra.mxu0 %v1648
        %1681 = vmatprep.subr.mxu0 0.0
        %1682 = vmatpush1.msra.mxu0 %v1649
        %1683 = vmatprep.subr.mxu0 0.0
        %1684 = vmatpush1.msra.mxu0 %v1650
        %1685 = vmatprep.subr.mxu0 0.0
        %1686 = vmatpush1.msra.mxu0 %v1651
        %1687 = vmatprep.subr.mxu0 0.0
        %1688 = vmatpush1.msra.mxu0 %v1652
        %1689 = vmatprep.subr.mxu0 0.0
        %1690 = vmatpush1.msra.mxu0 %v1653
        %1691 = vmatprep.subr.mxu0 0.0
        %1692 = vmatpush1.msra.mxu0 %v1654
        %1693 = vmatprep.subr.mxu0 0.0
        %1694 = vmatpush1.msra.mxu0 %v1655
        %1695 = vmatprep.subr.mxu0 0.0
        %1696 = vmatpush1.msra.mxu0 0.0
        %1697 = vmatprep.subr.mxu0 0.0
        %1698 = vmatpush1.msra.mxu0 0.0
        %1699 = vmatprep.subr.mxu0 0.0
        %1700 = vmatpush1.msra.mxu0 0.0
        %1701 = vmatprep.subr.mxu0 0.0
        %1702 = vmatpush1.msra.mxu0 0.0
        %1703 = vmatprep.subr.mxu0 0.0
        %1704 = vmatpush1.msra.mxu0 0.0
        %1705 = vmatprep.subr.mxu0 0.0
        %1706 = vmatpush1.msra.mxu0 0.0
        %1707 = vmatprep.subr.mxu0 0.0
        %1708 = vmatpush1.msra.mxu0 0.0
        %1709 = vmatprep.subr.mxu0 0.0
        %1710 = vmatpush1.msra.mxu0 0.0
        %1711 = vmatprep.subr.mxu0 0.0
        %1712 = vmatpush1.msra.mxu0 0.0
        %1713 = vmatprep.subr.mxu0 0.0
        %1714 = vmatpush1.msra.mxu0 0.0
        %1715 = vmatprep.subr.mxu0 0.0
        %1716 = vmatpush1.msra.mxu0 0.0
        %1717 = vmatprep.subr.mxu0 0.0
        %1718 = vmatpush1.msra.mxu0 0.0
        %1719 = vmatprep.subr.mxu0 0.0
        %1720 = vmatpush1.msra.mxu0 0.0
        %1721 = vmatprep.subr.mxu0 0.0
        %1722 = vmatpush1.msra.mxu0 0.0
        %1723 = vmatprep.subr.mxu0 0.0
        %1724 = vmatpush1.msra.mxu0 0.0
        %1725 = vmatprep.subr.mxu0 0.0
        %1726 = vmatpush1.msra.mxu0 0.0
        %1727 = vmatprep.mubr.f32.mxu0 0.0
        %1728 = vmatmul.mubr.f32.gmra.mrb[0].mxu0 %v1639
        %v1729 = vpop.f32.mrb[0].mxu0
        %v1730 = vadd.f32 %v1661, %v1729
        %v1731 = vpop.f32.mrb[0].mxu0
        %1732 = vdwg.mxu0
        %v1733 = vadd.f32 %v1730, %v1639
        %v1734 = vxor.u32 %v1733, 2147483648
        %v1735 = vmul.f32 %v1734, 1.442695
        %v1736 = vpow.pop %v1735
        %v1737 = vadd.f32 %v1736, 1.0
        %v1738 = vrcp.pop %v1737
        %v1739 = vmul.f32 1.0, %v1738
        %v1740 = vld [vmem:[%s7] sm:$0xff]
        %v1741 = vld [vmem:[%s7 + $0x8] sm:$0xff]
        %v1742 = vld [vmem:[%s7 + $0x10] sm:$0xff]
        %v1743 = vld [vmem:[%s7 + $0x18] sm:$0xff]
        %v1744 = vld [vmem:[%s7 + $0x20] sm:$0xff]
        %v1745 = vld [vmem:[%s7 + $0x28] sm:$0xff]
        %v1746 = vld [vmem:[%s7 + $0x30] sm:$0xff]
        %v1747 = vld [vmem:[%s7 + $0x38] sm:$0xff]
        %v1748 = vld [vmem:[%s7 + $0x40] sm:$0xff]
        %v1749 = vld [vmem:[%s7 + $0x48] sm:$0xff]
        %v1750 = vld [vmem:[%s7 + $0x50] sm:$0xff]
        %v1751 = vld [vmem:[%s7 + $0x58] sm:$0xff]
        %v1752 = vld [vmem:[%s7 + $0x60] sm:$0xff]
        %v1753 = vld [vmem:[%s7 + $0x68] sm:$0xff]
        %v1754 = vld [vmem:[%s7 + $0x70] sm:$0xff]
        %v1755 = vld [vmem:[%s7 + $0x78] sm:$0xff]
        %v1756 = vld [vmem:[#allocation13] sm:$0x1]
        %v1758 = vlaneseq
        %v1759 = vshrl.u32 %v1758, 7
        %v1760 = vsub.s32 0, %v1759
        %v1761 = vrot.slane %v1756, %v1760
        %1763 = vmatprep.subr.mxu0 0.0
        %1764 = vmatpush1.msra.mxu0 %v1740
        %1765 = vmatprep.subr.mxu0 0.0
        %1766 = vmatpush1.msra.mxu0 %v1741
        %1767 = vmatprep.subr.mxu0 0.0
        %1768 = vmatpush1.msra.mxu0 %v1742
        %1769 = vmatprep.subr.mxu0 0.0
        %1770 = vmatpush1.msra.mxu0 %v1743
        %1771 = vmatprep.subr.mxu0 0.0
        %1772 = vmatpush1.msra.mxu0 %v1744
        %1773 = vmatprep.subr.mxu0 0.0
        %1774 = vmatpush1.msra.mxu0 %v1745
        %1775 = vmatprep.subr.mxu0 0.0
        %1776 = vmatpush1.msra.mxu0 %v1746
        %1777 = vmatprep.subr.mxu0 0.0
        %1778 = vmatpush1.msra.mxu0 %v1747
        %1779 = vmatprep.subr.mxu0 0.0
        %1780 = vmatpush1.msra.mxu0 %v1748
        %1781 = vmatprep.subr.mxu0 0.0
        %1782 = vmatpush1.msra.mxu0 %v1749
        %1783 = vmatprep.subr.mxu0 0.0
        %1784 = vmatpush1.msra.mxu0 %v1750
        %1785 = vmatprep.subr.mxu0 0.0
        %1786 = vmatpush1.msra.mxu0 %v1751
        %1787 = vmatprep.subr.mxu0 0.0
        %1788 = vmatpush1.msra.mxu0 %v1752
        %1789 = vmatprep.subr.mxu0 0.0
        %1790 = vmatpush1.msra.mxu0 %v1753
        %1791 = vmatprep.subr.mxu0 0.0
        %1792 = vmatpush1.msra.mxu0 %v1754
        %1793 = vmatprep.subr.mxu0 0.0
        %1794 = vmatpush1.msra.mxu0 %v1755
        %1795 = vmatprep.subr.mxu0 0.0
        %1796 = vmatpush1.msra.mxu0 0.0
        %1797 = vmatprep.subr.mxu0 0.0
        %1798 = vmatpush1.msra.mxu0 0.0
        %1799 = vmatprep.subr.mxu0 0.0
        %1800 = vmatpush1.msra.mxu0 0.0
        %1801 = vmatprep.subr.mxu0 0.0
        %1802 = vmatpush1.msra.mxu0 0.0
        %1803 = vmatprep.subr.mxu0 0.0
        %1804 = vmatpush1.msra.mxu0 0.0
        %1805 = vmatprep.subr.mxu0 0.0
        %1806 = vmatpush1.msra.mxu0 0.0
        %1807 = vmatprep.subr.mxu0 0.0
        %1808 = vmatpush1.msra.mxu0 0.0
        %1809 = vmatprep.subr.mxu0 0.0
        %1810 = vmatpush1.msra.mxu0 0.0
        %1811 = vmatprep.subr.mxu0 0.0
        %1812 = vmatpush1.msra.mxu0 0.0
        %1813 = vmatprep.subr.mxu0 0.0
        %1814 = vmatpush1.msra.mxu0 0.0
        %1815 = vmatprep.subr.mxu0 0.0
        %1816 = vmatpush1.msra.mxu0 0.0
        %1817 = vmatprep.subr.mxu0 0.0
        %1818 = vmatpush1.msra.mxu0 0.0
        %1819 = vmatprep.subr.mxu0 0.0
        %1820 = vmatpush1.msra.mxu0 0.0
        %1821 = vmatprep.subr.mxu0 0.0
        %1822 = vmatpush1.msra.mxu0 0.0
        %1823 = vmatprep.subr.mxu0 0.0
        %1824 = vmatpush1.msra.mxu0 0.0
        %1825 = vmatprep.subr.mxu0 0.0
        %1826 = vmatpush1.msra.mxu0 0.0
        %1827 = vmatprep.mubr.f32.mxu0 0.0
        %1828 = vmatmul.mubr.f32.gmra.mrb[0].mxu0 %v1739
        %v1829 = vpop.f32.mrb[0].mxu0
        %v1830 = vadd.f32 %v1761, %v1829
        %v1831 = vpop.f32.mrb[0].mxu0
        %1832 = vdwg.mxu0
        %vm1833 = vcmask 130048
        %1834 = vst.msk [vmem:[%s440] sm:$0xff] %vm1833, %v1830
        %p1835 = scmp.lt.s32.totalorder %s27, 3
        %s1836 = scalar_select %p1835, %s27, 3
        %s1837 = smul.addr %s1836, 8
        %s1838 = scalar_lea.vmem %s9, %s1837
        // Predicated region
        $region89: #{tpu_custom_call.1} parent=55 // pred_check
          %p1839 = pneg %p239
        $region90: #{tpu_custom_call.1} parent=55 // pred_check_branch
          %1841 = sbr.rel (%p1839) target = $region92
        $region91: #{tpu_custom_call.1} parent=55 // pred_region
          _
        $region92: #{tpu_custom_call.1} parent=55 // pred_fallthru
          _
      $region56: #{tpu_custom_call.1} parent=5 // pred_fallthru
        _
      %p1842 = scmp.le.s32.totalorder 2, %s22
      // Predicated region
      $region93: #{tpu_custom_call.1} parent=5 // pred_check
        %p1843 = pneg %p1842
      $region94: #{tpu_custom_call.1} parent=5 // pred_check_branch
        %1845 = sbr.rel (%p1843) target = $region96
      $region95: #{tpu_custom_call.1} parent=5 // pred_region
        %s1846 = ssub.s32 %s22, 2
        // Predicated region
        $region97: #{tpu_custom_call.1} parent=95 // pred_check
          %p1847 = pneg %p245
        $region98: #{tpu_custom_call.1} parent=95 // pred_check_branch
          %1849 = sbr.rel (%p1847) target = $region100
        $region99: #{tpu_custom_call.1} parent=95 // pred_region
          %p1850 = scmp.lt.s32.totalorder %s28, 3
          %s1851 = scalar_select %p1850, %s28, 3
          %s1852 = smul.addr %s1851, 8
          %s1853 = scalar_lea.vmem %s9, %s1852
        $region100: #{tpu_custom_call.1} parent=95 // pred_fallthru
          _
      $region96: #{tpu_custom_call.1} parent=5 // pred_fallthru
        _
    $region6: #{tpu_custom_call.1} parent=1 // loop_footer
      %s26 = sadd.s32 1, %s22
    $region7: #{tpu_custom_call.1} parent=1 // loop_footer_branch
      %21 = sbr.rel target = $region3
    $region8: #{tpu_custom_call.1} parent=1 // loop_exit
      _
    %1854 = vsyncpa [#allocation3], 1
    %s1855 = scalar_lea.sflag [#allocation3], 1
    %1856 = vsyncpa %s1855, 1
    %1857 = vsyncpa [#allocation5], 1
    %1858 = vsyncpa [#allocation8], 1
    %1859 = vsyncpa [#allocation11], 1
    %1860 = vsyncpa [#allocation14], 1

</llo_original>
